<compile_context>
chip_gen: v7x
topology: tpu7x:2x2x1
jax: 0.10.0
libtpu: 0.0.40
codegen_flags: <defaults>
</compile_context>

<pallas_src>
import numpy as np
import jax
import jax.numpy as jnp
from jax import lax
from jax.experimental import pallas as pl
from jax.experimental.pallas import tpu as pltpu

N_ATOM = 10                               # points per chain
N_DIST = 45                               # 9 + 8 + ... + 1 pair distances
N_ANG = 8                                 # bond angles
N_TOR = 7                                 # torsion COS / SIN terms
N_OUT = N_DIST + N_ANG + N_TOR + N_TOR    # 67 fused output rows
TBL_DEFAULT = 512                         # lane (batch) tile, multiple of 128


# ----------------------------- Pallas kernel -------------------------------
def feature_kernel(pc_ref, out_ref):
    """Feature_old.forward for one lane tile of TBL samples.

    pc_ref : (3, 10, TBL) coordinate-major points  (xyz, atom, sample-lane)
    out_ref: (67, TBL) fused lane-dense output slab:
             rows  0:45  pair distances (gap order V12, V13, ..., V110)
             rows 45:53  bond-angle cosines (acos applied in the wrapper)
             rows 53:60  torsion COS
             rows 60:67  torsion SIN
    """
    px = pc_ref[0]                         # (10, TBL)
    py = pc_ref[1]
    pz = pc_ref[2]

    # Bond vectors B_k = P_{k+1} - P_k  (== the gap-1 differences), (9, TBL)
    bx = px[1:] - px[:-1]
    by = py[1:] - py[:-1]
    bz = pz[1:] - pz[:-1]

    # ---------------- 45 pair distances: gap 1 (V12) ... gap 9 (V110) -------
    out_ref[0:9, :] = jnp.sqrt(bx * bx + by * by + bz * bz)
    off = 9
    for g in range(2, N_ATOM):             # static, unrolled at trace time
        w = N_ATOM - g
        dx = px[g:] - px[:w]
        dy = py[g:] - py[:w]
        dz = pz[g:] - pz[:w]
        out_ref[off:off + w, :] = jnp.sqrt(dx * dx + dy * dy + dz * dz)
        off += w

    # ---------------- 8 bond-angle cosines: u = B_k, v = B_{k+1} ------------
    ux, uy, uz = bx[0:8], by[0:8], bz[0:8]
    vx, vy, vz = bx[1:9], by[1:9], bz[1:9]
    duv = ux * vx + uy * vy + uz * vz
    nu2 = ux * ux + uy * uy + uz * uz
    nv2 = vx * vx + vy * vy + vz * vz
    out_ref[45:53, :] = duv * lax.rsqrt(nu2 * nv2)
    # TODO(synk): torch.acos is applied in the JAX wrapper on this cosine
    # block — inverse-trig has no guaranteed Mosaic lowering.

    # ---------------- 7 torsion COS / SIN: a=B_k, m=B_{k+1}, c=B_{k+2} ------
    ax, ay, az = bx[0:7], by[0:7], bz[0:7]
    mx, my, mz = bx[1:8], by[1:8], bz[1:8]
    cx, cy, cz = bx[2:9], by[2:9], bz[2:9]

    # C_k = a x m ; C_{k+1} = m x c ; N_k = C_{k+1} x m
    c0x = ay * mz - az * my
    c0y = az * mx - ax * mz
    c0z = ax * my - ay * mx
    c1x = my * cz - mz * cy
    c1y = mz * cx - mx * cz
    c1z = mx * cy - my * cx
    nx = c1y * mz - c1z * my
    ny = c1z * mx - c1x * mz
    nz = c1x * my - c1y * mx

    n0sq = c0x * c0x + c0y * c0y + c0z * c0z
    n1sq = c1x * c1x + c1y * c1y + c1z * c1z
    nnsq = nx * nx + ny * ny + nz * nz

    out_ref[53:60, :] = (c0x * c1x + c0y * c1y + c0z * c1z) * lax.rsqrt(n0sq * n1sq)
    out_ref[60:67, :] = (c0x * nx + c0y * ny + c0z * nz) * lax.rsqrt(n0sq * nnsq)


# ------------------------------ wrapper -------------------------------------
def feature_old_forward(U, tbl=TBL_DEFAULT):
    """JAX/Pallas equivalent of Feature_old.forward.  U: (n, 30) float."""
    n = U.shape[0]

    # Coordinate-major with batch on the lane axis: (3, 10, n).  Pure layout
    # plumbing done once outside the kernel.
    Pc = jnp.transpose(U.reshape(n, N_ATOM, 3).astype(jnp.float32), (2, 1, 0))

    n_pad = -(-n // tbl) * tbl
    if n_pad != n:
        # Replicate the last sample so padded lanes stay finite (discarded).
        Pc = jnp.pad(Pc, ((0, 0), (0, 0), (0, n_pad - n)), mode="edge")

    out = pl.pallas_call(
        feature_kernel,
        out_shape=jax.ShapeDtypeStruct((N_OUT, n_pad), jnp.float32),
        grid=(n_pad // tbl,),
        in_specs=[pl.BlockSpec((3, N_ATOM, tbl), lambda i: (0, 0, i))],
        out_specs=pl.BlockSpec((N_OUT, tbl), lambda i: (0, i)),
        compiler_params=pltpu.CompilerParams(
            dimension_semantics=("parallel",)),
    )(Pc)

    out = out[:, :n]
    dist = out[0:N_DIST].T                               # (n, 45)
    angcos = out[N_DIST:N_DIST + N_ANG].T                # (n, 8)
    cosv = out[N_DIST + N_ANG:N_DIST + N_ANG + N_TOR].T  # (n, 7)
    sinv = out[N_DIST + N_ANG + N_TOR:N_OUT].T           # (n, 7)

    angles = jnp.arccos(angcos)
    # NB: the PyTorch forward also builds `out = cat((Dist, Angles, COS, SIN))`
    # but never returns it — dead code, intentionally omitted.
    return dist, cosv, sinv, angles


# --------------------------- pure-JAX reference ------------------------------
def feature_old_ref(U):
    n = U.shape[0]
    P = U.reshape(n, N_ATOM, 3)
    Vs = [P[:, g:, :] - P[:, :N_ATOM - g, :] for g in range(1, N_ATOM)]
    V = jnp.concatenate(Vs, axis=1)                       # (n, 45, 3)
    V12 = Vs[0]                                           # (n, 9, 3)
    C = jnp.cross(V12[:, 0:8, :], V12[:, 1:9, :])         # (n, 8, 3)
    Nv = jnp.cross(C[:, 1:8, :], V12[:, 1:8, :])          # (n, 7, 3)
    nrm = lambda a: jnp.linalg.norm(a, axis=2)
    COS = jnp.sum(C[:, 0:7] * C[:, 1:8], axis=2) / nrm(C[:, 0:7]) / nrm(C[:, 1:8])
    SIN = jnp.sum(C[:, 0:7] * Nv, axis=2) / nrm(C[:, 0:7]) / nrm(Nv)
    Angles = jnp.arccos(jnp.sum(V12[:, 0:8] * V12[:, 1:9], axis=2)
                        / nrm(V12[:, 0:8]) / nrm(V12[:, 1:9]))
    Dist = nrm(V)
    return Dist, COS, SIN, Angles


# ---------------------------------- main -------------------------------------
if __name__ == "__main__":
    key = jax.random.PRNGKey(0)
    fwd = jax.jit(feature_old_forward, static_argnums=1)

    # (n, lane-tile) pairs: tiny batch (padded to one tile) and a non-multiple
    # batch that exercises padding + a multi-step grid with a smaller tile.
    for n, tbl in ((8, TBL_DEFAULT), (200, 128)):
        key, sub = jax.random.split(key)
        U = jax.random.normal(sub, (n, 3 * N_ATOM), dtype=jnp.float32)

        Dist, COS, SIN, Angles = jax.block_until_ready(fwd(U, tbl))

        assert Dist.shape == (n, N_DIST)
        assert COS.shape == (n, N_TOR)
        assert SIN.shape == (n, N_TOR)
        assert Angles.shape == (n, N_ANG)

        Dist_r, COS_r, SIN_r, Ang_r = feature_old_ref(U)
        np.testing.assert_allclose(np.asarray(Dist), np.asarray(Dist_r),
                                   rtol=1e-4, atol=1e-4)
        np.testing.assert_allclose(np.asarray(COS), np.asarray(COS_r),
                                   rtol=1e-4, atol=1e-4)
        np.testing.assert_allclose(np.asarray(SIN), np.asarray(SIN_r),
                                   rtol=1e-4, atol=1e-4)
        # arccos amplifies cosine rounding near |cos|=1; slightly looser atol.
        np.testing.assert_allclose(np.asarray(Angles), np.asarray(Ang_r),
                                   rtol=1e-4, atol=1e-3)

    print("KERNEL_OK")
</pallas_src>

<mosaic_0001>
module attributes {stable_mosaic.version = 11 : i64} {
  func.func @feature_kernel(%arg0: i32, %arg1: memref<3x10x512xf32, #tpu.memory_space<vmem>>, %arg2: memref<67x512xf32, #tpu.memory_space<vmem>>) attributes {dimension_semantics = [#tpu.dimension_semantics<parallel>], iteration_bounds = array<i64: 1>, scalar_prefetch = 0 : i64, scratch_operands = 0 : i64, tpu.core_type = #tpu.core_type<tc>, window_params = [{transform_indices = @transform_0, window_bounds = array<i64: 3, 10, 512>}, {transform_indices = @transform_1, window_bounds = array<i64: 67, 512>}]} {
    %c0 = arith.constant 0 : index
    %c0_0 = arith.constant 0 : index
    %c0_1 = arith.constant 0 : index
    %0 = vector.load %arg1[%c0, %c0_0, %c0_1] : memref<3x10x512xf32, #tpu.memory_space<vmem>>, vector<1x10x512xf32>
    %1 = vector.shape_cast %0 : vector<1x10x512xf32> to vector<10x512xf32>
    %c1 = arith.constant 1 : index
    %c0_2 = arith.constant 0 : index
    %c0_3 = arith.constant 0 : index
    %2 = vector.load %arg1[%c1, %c0_2, %c0_3] : memref<3x10x512xf32, #tpu.memory_space<vmem>>, vector<1x10x512xf32>
    %3 = vector.shape_cast %2 : vector<1x10x512xf32> to vector<10x512xf32>
    %c2 = arith.constant 2 : index
    %c0_4 = arith.constant 0 : index
    %c0_5 = arith.constant 0 : index
    %4 = vector.load %arg1[%c2, %c0_4, %c0_5] : memref<3x10x512xf32, #tpu.memory_space<vmem>>, vector<1x10x512xf32>
    %5 = vector.shape_cast %4 : vector<1x10x512xf32> to vector<10x512xf32>
    %6 = vector.extract_strided_slice %1 {offsets = [1, 0], sizes = [9, 512], strides = [1, 1]} : vector<10x512xf32> to vector<9x512xf32>
    %7 = vector.extract_strided_slice %1 {offsets = [0, 0], sizes = [9, 512], strides = [1, 1]} : vector<10x512xf32> to vector<9x512xf32>
    %8 = arith.subf %6, %7 : vector<9x512xf32>
    %9 = vector.extract_strided_slice %3 {offsets = [1, 0], sizes = [9, 512], strides = [1, 1]} : vector<10x512xf32> to vector<9x512xf32>
    %10 = vector.extract_strided_slice %3 {offsets = [0, 0], sizes = [9, 512], strides = [1, 1]} : vector<10x512xf32> to vector<9x512xf32>
    %11 = arith.subf %9, %10 : vector<9x512xf32>
    %12 = vector.extract_strided_slice %5 {offsets = [1, 0], sizes = [9, 512], strides = [1, 1]} : vector<10x512xf32> to vector<9x512xf32>
    %13 = vector.extract_strided_slice %5 {offsets = [0, 0], sizes = [9, 512], strides = [1, 1]} : vector<10x512xf32> to vector<9x512xf32>
    %14 = arith.subf %12, %13 : vector<9x512xf32>
    %15 = arith.mulf %8, %8 : vector<9x512xf32>
    %16 = arith.mulf %11, %11 : vector<9x512xf32>
    %17 = arith.addf %15, %16 : vector<9x512xf32>
    %18 = arith.mulf %14, %14 : vector<9x512xf32>
    %19 = arith.addf %17, %18 : vector<9x512xf32>
    %20 = math.sqrt %19 : vector<9x512xf32>
    %c0_6 = arith.constant 0 : index
    %c0_7 = arith.constant 0 : index
    %21 = vector.load %arg2[%c0_6, %c0_7] : memref<67x512xf32, #tpu.memory_space<vmem>>, vector<9x512xf32>
    tpu.vector_store %arg2[%c0_6, %c0_7], %20 {strides = array<i32>} : memref<67x512xf32, #tpu.memory_space<vmem>>, vector<9x512xf32>,
    %22 = vector.extract_strided_slice %1 {offsets = [2, 0], sizes = [8, 512], strides = [1, 1]} : vector<10x512xf32> to vector<8x512xf32>
    %23 = vector.extract_strided_slice %1 {offsets = [0, 0], sizes = [8, 512], strides = [1, 1]} : vector<10x512xf32> to vector<8x512xf32>
    %24 = arith.subf %22, %23 : vector<8x512xf32>
    %25 = vector.extract_strided_slice %3 {offsets = [2, 0], sizes = [8, 512], strides = [1, 1]} : vector<10x512xf32> to vector<8x512xf32>
    %26 = vector.extract_strided_slice %3 {offsets = [0, 0], sizes = [8, 512], strides = [1, 1]} : vector<10x512xf32> to vector<8x512xf32>
    %27 = arith.subf %25, %26 : vector<8x512xf32>
    %28 = vector.extract_strided_slice %5 {offsets = [2, 0], sizes = [8, 512], strides = [1, 1]} : vector<10x512xf32> to vector<8x512xf32>
    %29 = vector.extract_strided_slice %5 {offsets = [0, 0], sizes = [8, 512], strides = [1, 1]} : vector<10x512xf32> to vector<8x512xf32>
    %30 = arith.subf %28, %29 : vector<8x512xf32>
    %31 = arith.mulf %24, %24 : vector<8x512xf32>
    %32 = arith.mulf %27, %27 : vector<8x512xf32>
    %33 = arith.addf %31, %32 : vector<8x512xf32>
    %34 = arith.mulf %30, %30 : vector<8x512xf32>
    %35 = arith.addf %33, %34 : vector<8x512xf32>
    %36 = math.sqrt %35 : vector<8x512xf32>
    %c9 = arith.constant 9 : index
    %c0_8 = arith.constant 0 : index
    %37 = vector.load %arg2[%c9, %c0_8] : memref<67x512xf32, #tpu.memory_space<vmem>>, vector<8x512xf32>
    tpu.vector_store %arg2[%c9, %c0_8], %36 {strides = array<i32>} : memref<67x512xf32, #tpu.memory_space<vmem>>, vector<8x512xf32>,
    %38 = vector.extract_strided_slice %1 {offsets = [3, 0], sizes = [7, 512], strides = [1, 1]} : vector<10x512xf32> to vector<7x512xf32>
    %39 = vector.extract_strided_slice %1 {offsets = [0, 0], sizes = [7, 512], strides = [1, 1]} : vector<10x512xf32> to vector<7x512xf32>
    %40 = arith.subf %38, %39 : vector<7x512xf32>
    %41 = vector.extract_strided_slice %3 {offsets = [3, 0], sizes = [7, 512], strides = [1, 1]} : vector<10x512xf32> to vector<7x512xf32>
    %42 = vector.extract_strided_slice %3 {offsets = [0, 0], sizes = [7, 512], strides = [1, 1]} : vector<10x512xf32> to vector<7x512xf32>
    %43 = arith.subf %41, %42 : vector<7x512xf32>
    %44 = vector.extract_strided_slice %5 {offsets = [3, 0], sizes = [7, 512], strides = [1, 1]} : vector<10x512xf32> to vector<7x512xf32>
    %45 = vector.extract_strided_slice %5 {offsets = [0, 0], sizes = [7, 512], strides = [1, 1]} : vector<10x512xf32> to vector<7x512xf32>
    %46 = arith.subf %44, %45 : vector<7x512xf32>
    %47 = arith.mulf %40, %40 : vector<7x512xf32>
    %48 = arith.mulf %43, %43 : vector<7x512xf32>
    %49 = arith.addf %47, %48 : vector<7x512xf32>
    %50 = arith.mulf %46, %46 : vector<7x512xf32>
    %51 = arith.addf %49, %50 : vector<7x512xf32>
    %52 = math.sqrt %51 : vector<7x512xf32>
    %c17 = arith.constant 17 : index
    %c0_9 = arith.constant 0 : index
    %53 = vector.load %arg2[%c17, %c0_9] : memref<67x512xf32, #tpu.memory_space<vmem>>, vector<7x512xf32>
    tpu.vector_store %arg2[%c17, %c0_9], %52 {strides = array<i32>} : memref<67x512xf32, #tpu.memory_space<vmem>>, vector<7x512xf32>,
    %54 = vector.extract_strided_slice %1 {offsets = [4, 0], sizes = [6, 512], strides = [1, 1]} : vector<10x512xf32> to vector<6x512xf32>
    %55 = vector.extract_strided_slice %1 {offsets = [0, 0], sizes = [6, 512], strides = [1, 1]} : vector<10x512xf32> to vector<6x512xf32>
    %56 = arith.subf %54, %55 : vector<6x512xf32>
    %57 = vector.extract_strided_slice %3 {offsets = [4, 0], sizes = [6, 512], strides = [1, 1]} : vector<10x512xf32> to vector<6x512xf32>
    %58 = vector.extract_strided_slice %3 {offsets = [0, 0], sizes = [6, 512], strides = [1, 1]} : vector<10x512xf32> to vector<6x512xf32>
    %59 = arith.subf %57, %58 : vector<6x512xf32>
    %60 = vector.extract_strided_slice %5 {offsets = [4, 0], sizes = [6, 512], strides = [1, 1]} : vector<10x512xf32> to vector<6x512xf32>
    %61 = vector.extract_strided_slice %5 {offsets = [0, 0], sizes = [6, 512], strides = [1, 1]} : vector<10x512xf32> to vector<6x512xf32>
    %62 = arith.subf %60, %61 : vector<6x512xf32>
    %63 = arith.mulf %56, %56 : vector<6x512xf32>
    %64 = arith.mulf %59, %59 : vector<6x512xf32>
    %65 = arith.addf %63, %64 : vector<6x512xf32>
    %66 = arith.mulf %62, %62 : vector<6x512xf32>
    %67 = arith.addf %65, %66 : vector<6x512xf32>
    %68 = math.sqrt %67 : vector<6x512xf32>
    %c24 = arith.constant 24 : index
    %c0_10 = arith.constant 0 : index
    %69 = vector.load %arg2[%c24, %c0_10] : memref<67x512xf32, #tpu.memory_space<vmem>>, vector<6x512xf32>
    tpu.vector_store %arg2[%c24, %c0_10], %68 {strides = array<i32>} : memref<67x512xf32, #tpu.memory_space<vmem>>, vector<6x512xf32>,
    %70 = vector.extract_strided_slice %1 {offsets = [5, 0], sizes = [5, 512], strides = [1, 1]} : vector<10x512xf32> to vector<5x512xf32>
    %71 = vector.extract_strided_slice %1 {offsets = [0, 0], sizes = [5, 512], strides = [1, 1]} : vector<10x512xf32> to vector<5x512xf32>
    %72 = arith.subf %70, %71 : vector<5x512xf32>
    %73 = vector.extract_strided_slice %3 {offsets = [5, 0], sizes = [5, 512], strides = [1, 1]} : vector<10x512xf32> to vector<5x512xf32>
    %74 = vector.extract_strided_slice %3 {offsets = [0, 0], sizes = [5, 512], strides = [1, 1]} : vector<10x512xf32> to vector<5x512xf32>
    %75 = arith.subf %73, %74 : vector<5x512xf32>
    %76 = vector.extract_strided_slice %5 {offsets = [5, 0], sizes = [5, 512], strides = [1, 1]} : vector<10x512xf32> to vector<5x512xf32>
    %77 = vector.extract_strided_slice %5 {offsets = [0, 0], sizes = [5, 512], strides = [1, 1]} : vector<10x512xf32> to vector<5x512xf32>
    %78 = arith.subf %76, %77 : vector<5x512xf32>
    %79 = arith.mulf %72, %72 : vector<5x512xf32>
    %80 = arith.mulf %75, %75 : vector<5x512xf32>
    %81 = arith.addf %79, %80 : vector<5x512xf32>
    %82 = arith.mulf %78, %78 : vector<5x512xf32>
    %83 = arith.addf %81, %82 : vector<5x512xf32>
    %84 = math.sqrt %83 : vector<5x512xf32>
    %c30 = arith.constant 30 : index
    %c0_11 = arith.constant 0 : index
    %85 = vector.load %arg2[%c30, %c0_11] : memref<67x512xf32, #tpu.memory_space<vmem>>, vector<5x512xf32>
    tpu.vector_store %arg2[%c30, %c0_11], %84 {strides = array<i32>} : memref<67x512xf32, #tpu.memory_space<vmem>>, vector<5x512xf32>,
    %86 = vector.extract_strided_slice %1 {offsets = [6, 0], sizes = [4, 512], strides = [1, 1]} : vector<10x512xf32> to vector<4x512xf32>
    %87 = vector.extract_strided_slice %1 {offsets = [0, 0], sizes = [4, 512], strides = [1, 1]} : vector<10x512xf32> to vector<4x512xf32>
    %88 = arith.subf %86, %87 : vector<4x512xf32>
    %89 = vector.extract_strided_slice %3 {offsets = [6, 0], sizes = [4, 512], strides = [1, 1]} : vector<10x512xf32> to vector<4x512xf32>
    %90 = vector.extract_strided_slice %3 {offsets = [0, 0], sizes = [4, 512], strides = [1, 1]} : vector<10x512xf32> to vector<4x512xf32>
    %91 = arith.subf %89, %90 : vector<4x512xf32>
    %92 = vector.extract_strided_slice %5 {offsets = [6, 0], sizes = [4, 512], strides = [1, 1]} : vector<10x512xf32> to vector<4x512xf32>
    %93 = vector.extract_strided_slice %5 {offsets = [0, 0], sizes = [4, 512], strides = [1, 1]} : vector<10x512xf32> to vector<4x512xf32>
    %94 = arith.subf %92, %93 : vector<4x512xf32>
    %95 = arith.mulf %88, %88 : vector<4x512xf32>
    %96 = arith.mulf %91, %91 : vector<4x512xf32>
    %97 = arith.addf %95, %96 : vector<4x512xf32>
    %98 = arith.mulf %94, %94 : vector<4x512xf32>
    %99 = arith.addf %97, %98 : vector<4x512xf32>
    %100 = math.sqrt %99 : vector<4x512xf32>
    %c35 = arith.constant 35 : index
    %c0_12 = arith.constant 0 : index
    %101 = vector.load %arg2[%c35, %c0_12] : memref<67x512xf32, #tpu.memory_space<vmem>>, vector<4x512xf32>
    tpu.vector_store %arg2[%c35, %c0_12], %100 {strides = array<i32>} : memref<67x512xf32, #tpu.memory_space<vmem>>, vector<4x512xf32>,
    %102 = vector.extract_strided_slice %1 {offsets = [7, 0], sizes = [3, 512], strides = [1, 1]} : vector<10x512xf32> to vector<3x512xf32>
    %103 = vector.extract_strided_slice %1 {offsets = [0, 0], sizes = [3, 512], strides = [1, 1]} : vector<10x512xf32> to vector<3x512xf32>
    %104 = arith.subf %102, %103 : vector<3x512xf32>
    %105 = vector.extract_strided_slice %3 {offsets = [7, 0], sizes = [3, 512], strides = [1, 1]} : vector<10x512xf32> to vector<3x512xf32>
    %106 = vector.extract_strided_slice %3 {offsets = [0, 0], sizes = [3, 512], strides = [1, 1]} : vector<10x512xf32> to vector<3x512xf32>
    %107 = arith.subf %105, %106 : vector<3x512xf32>
    %108 = vector.extract_strided_slice %5 {offsets = [7, 0], sizes = [3, 512], strides = [1, 1]} : vector<10x512xf32> to vector<3x512xf32>
    %109 = vector.extract_strided_slice %5 {offsets = [0, 0], sizes = [3, 512], strides = [1, 1]} : vector<10x512xf32> to vector<3x512xf32>
    %110 = arith.subf %108, %109 : vector<3x512xf32>
    %111 = arith.mulf %104, %104 : vector<3x512xf32>
    %112 = arith.mulf %107, %107 : vector<3x512xf32>
    %113 = arith.addf %111, %112 : vector<3x512xf32>
    %114 = arith.mulf %110, %110 : vector<3x512xf32>
    %115 = arith.addf %113, %114 : vector<3x512xf32>
    %116 = math.sqrt %115 : vector<3x512xf32>
    %c39 = arith.constant 39 : index
    %c0_13 = arith.constant 0 : index
    %117 = vector.load %arg2[%c39, %c0_13] : memref<67x512xf32, #tpu.memory_space<vmem>>, vector<3x512xf32>
    tpu.vector_store %arg2[%c39, %c0_13], %116 {strides = array<i32>} : memref<67x512xf32, #tpu.memory_space<vmem>>, vector<3x512xf32>,
    %118 = vector.extract_strided_slice %1 {offsets = [8, 0], sizes = [2, 512], strides = [1, 1]} : vector<10x512xf32> to vector<2x512xf32>
    %119 = vector.extract_strided_slice %1 {offsets = [0, 0], sizes = [2, 512], strides = [1, 1]} : vector<10x512xf32> to vector<2x512xf32>
    %120 = arith.subf %118, %119 : vector<2x512xf32>
    %121 = vector.extract_strided_slice %3 {offsets = [8, 0], sizes = [2, 512], strides = [1, 1]} : vector<10x512xf32> to vector<2x512xf32>
    %122 = vector.extract_strided_slice %3 {offsets = [0, 0], sizes = [2, 512], strides = [1, 1]} : vector<10x512xf32> to vector<2x512xf32>
    %123 = arith.subf %121, %122 : vector<2x512xf32>
    %124 = vector.extract_strided_slice %5 {offsets = [8, 0], sizes = [2, 512], strides = [1, 1]} : vector<10x512xf32> to vector<2x512xf32>
    %125 = vector.extract_strided_slice %5 {offsets = [0, 0], sizes = [2, 512], strides = [1, 1]} : vector<10x512xf32> to vector<2x512xf32>
    %126 = arith.subf %124, %125 : vector<2x512xf32>
    %127 = arith.mulf %120, %120 : vector<2x512xf32>
    %128 = arith.mulf %123, %123 : vector<2x512xf32>
    %129 = arith.addf %127, %128 : vector<2x512xf32>
    %130 = arith.mulf %126, %126 : vector<2x512xf32>
    %131 = arith.addf %129, %130 : vector<2x512xf32>
    %132 = math.sqrt %131 : vector<2x512xf32>
    %c42 = arith.constant 42 : index
    %c0_14 = arith.constant 0 : index
    %133 = vector.load %arg2[%c42, %c0_14] : memref<67x512xf32, #tpu.memory_space<vmem>>, vector<2x512xf32>
    tpu.vector_store %arg2[%c42, %c0_14], %132 {strides = array<i32>} : memref<67x512xf32, #tpu.memory_space<vmem>>, vector<2x512xf32>,
    %134 = vector.extract_strided_slice %1 {offsets = [9, 0], sizes = [1, 512], strides = [1, 1]} : vector<10x512xf32> to vector<1x512xf32>
    %135 = vector.extract_strided_slice %1 {offsets = [0, 0], sizes = [1, 512], strides = [1, 1]} : vector<10x512xf32> to vector<1x512xf32>
    %136 = arith.subf %134, %135 : vector<1x512xf32>
    %137 = vector.extract_strided_slice %3 {offsets = [9, 0], sizes = [1, 512], strides = [1, 1]} : vector<10x512xf32> to vector<1x512xf32>
    %138 = vector.extract_strided_slice %3 {offsets = [0, 0], sizes = [1, 512], strides = [1, 1]} : vector<10x512xf32> to vector<1x512xf32>
    %139 = arith.subf %137, %138 : vector<1x512xf32>
    %140 = vector.extract_strided_slice %5 {offsets = [9, 0], sizes = [1, 512], strides = [1, 1]} : vector<10x512xf32> to vector<1x512xf32>
    %141 = vector.extract_strided_slice %5 {offsets = [0, 0], sizes = [1, 512], strides = [1, 1]} : vector<10x512xf32> to vector<1x512xf32>
    %142 = arith.subf %140, %141 : vector<1x512xf32>
    %143 = arith.mulf %136, %136 : vector<1x512xf32>
    %144 = arith.mulf %139, %139 : vector<1x512xf32>
    %145 = arith.addf %143, %144 : vector<1x512xf32>
    %146 = arith.mulf %142, %142 : vector<1x512xf32>
    %147 = arith.addf %145, %146 : vector<1x512xf32>
    %148 = math.sqrt %147 : vector<1x512xf32>
    %c44 = arith.constant 44 : index
    %c0_15 = arith.constant 0 : index
    %149 = vector.load %arg2[%c44, %c0_15] : memref<67x512xf32, #tpu.memory_space<vmem>>, vector<1x512xf32>
    tpu.vector_store %arg2[%c44, %c0_15], %148 {strides = array<i32>} : memref<67x512xf32, #tpu.memory_space<vmem>>, vector<1x512xf32>,
    %150 = vector.extract_strided_slice %8 {offsets = [0, 0], sizes = [8, 512], strides = [1, 1]} : vector<9x512xf32> to vector<8x512xf32>
    %151 = vector.extract_strided_slice %11 {offsets = [0, 0], sizes = [8, 512], strides = [1, 1]} : vector<9x512xf32> to vector<8x512xf32>
    %152 = vector.extract_strided_slice %14 {offsets = [0, 0], sizes = [8, 512], strides = [1, 1]} : vector<9x512xf32> to vector<8x512xf32>
    %153 = vector.extract_strided_slice %8 {offsets = [1, 0], sizes = [8, 512], strides = [1, 1]} : vector<9x512xf32> to vector<8x512xf32>
    %154 = vector.extract_strided_slice %11 {offsets = [1, 0], sizes = [8, 512], strides = [1, 1]} : vector<9x512xf32> to vector<8x512xf32>
    %155 = vector.extract_strided_slice %14 {offsets = [1, 0], sizes = [8, 512], strides = [1, 1]} : vector<9x512xf32> to vector<8x512xf32>
    %156 = arith.mulf %150, %153 : vector<8x512xf32>
    %157 = arith.mulf %151, %154 : vector<8x512xf32>
    %158 = arith.addf %156, %157 : vector<8x512xf32>
    %159 = arith.mulf %152, %155 : vector<8x512xf32>
    %160 = arith.addf %158, %159 : vector<8x512xf32>
    %161 = arith.mulf %150, %150 : vector<8x512xf32>
    %162 = arith.mulf %151, %151 : vector<8x512xf32>
    %163 = arith.addf %161, %162 : vector<8x512xf32>
    %164 = arith.mulf %152, %152 : vector<8x512xf32>
    %165 = arith.addf %163, %164 : vector<8x512xf32>
    %166 = arith.mulf %153, %153 : vector<8x512xf32>
    %167 = arith.mulf %154, %154 : vector<8x512xf32>
    %168 = arith.addf %166, %167 : vector<8x512xf32>
    %169 = arith.mulf %155, %155 : vector<8x512xf32>
    %170 = arith.addf %168, %169 : vector<8x512xf32>
    %171 = arith.mulf %165, %170 : vector<8x512xf32>
    %172 = math.rsqrt %171 : vector<8x512xf32>
    %173 = arith.mulf %160, %172 : vector<8x512xf32>
    %c45 = arith.constant 45 : index
    %c0_16 = arith.constant 0 : index
    %174 = vector.load %arg2[%c45, %c0_16] : memref<67x512xf32, #tpu.memory_space<vmem>>, vector<8x512xf32>
    tpu.vector_store %arg2[%c45, %c0_16], %173 {strides = array<i32>} : memref<67x512xf32, #tpu.memory_space<vmem>>, vector<8x512xf32>,
    %175 = vector.extract_strided_slice %8 {offsets = [0, 0], sizes = [7, 512], strides = [1, 1]} : vector<9x512xf32> to vector<7x512xf32>
    %176 = vector.extract_strided_slice %11 {offsets = [0, 0], sizes = [7, 512], strides = [1, 1]} : vector<9x512xf32> to vector<7x512xf32>
    %177 = vector.extract_strided_slice %14 {offsets = [0, 0], sizes = [7, 512], strides = [1, 1]} : vector<9x512xf32> to vector<7x512xf32>
    %178 = vector.extract_strided_slice %8 {offsets = [1, 0], sizes = [7, 512], strides = [1, 1]} : vector<9x512xf32> to vector<7x512xf32>
    %179 = vector.extract_strided_slice %11 {offsets = [1, 0], sizes = [7, 512], strides = [1, 1]} : vector<9x512xf32> to vector<7x512xf32>
    %180 = vector.extract_strided_slice %14 {offsets = [1, 0], sizes = [7, 512], strides = [1, 1]} : vector<9x512xf32> to vector<7x512xf32>
    %181 = vector.extract_strided_slice %8 {offsets = [2, 0], sizes = [7, 512], strides = [1, 1]} : vector<9x512xf32> to vector<7x512xf32>
    %182 = vector.extract_strided_slice %11 {offsets = [2, 0], sizes = [7, 512], strides = [1, 1]} : vector<9x512xf32> to vector<7x512xf32>
    %183 = vector.extract_strided_slice %14 {offsets = [2, 0], sizes = [7, 512], strides = [1, 1]} : vector<9x512xf32> to vector<7x512xf32>
    %184 = arith.mulf %176, %180 : vector<7x512xf32>
    %185 = arith.mulf %177, %179 : vector<7x512xf32>
    %186 = arith.subf %184, %185 : vector<7x512xf32>
    %187 = arith.mulf %177, %178 : vector<7x512xf32>
    %188 = arith.mulf %175, %180 : vector<7x512xf32>
    %189 = arith.subf %187, %188 : vector<7x512xf32>
    %190 = arith.mulf %175, %179 : vector<7x512xf32>
    %191 = arith.mulf %176, %178 : vector<7x512xf32>
    %192 = arith.subf %190, %191 : vector<7x512xf32>
    %193 = arith.mulf %179, %183 : vector<7x512xf32>
    %194 = arith.mulf %180, %182 : vector<7x512xf32>
    %195 = arith.subf %193, %194 : vector<7x512xf32>
    %196 = arith.mulf %180, %181 : vector<7x512xf32>
    %197 = arith.mulf %178, %183 : vector<7x512xf32>
    %198 = arith.subf %196, %197 : vector<7x512xf32>
    %199 = arith.mulf %178, %182 : vector<7x512xf32>
    %200 = arith.mulf %179, %181 : vector<7x512xf32>
    %201 = arith.subf %199, %200 : vector<7x512xf32>
    %202 = arith.mulf %198, %180 : vector<7x512xf32>
    %203 = arith.mulf %201, %179 : vector<7x512xf32>
    %204 = arith.subf %202, %203 : vector<7x512xf32>
    %205 = arith.mulf %201, %178 : vector<7x512xf32>
    %206 = arith.mulf %195, %180 : vector<7x512xf32>
    %207 = arith.subf %205, %206 : vector<7x512xf32>
    %208 = arith.mulf %195, %179 : vector<7x512xf32>
    %209 = arith.mulf %198, %178 : vector<7x512xf32>
    %210 = arith.subf %208, %209 : vector<7x512xf32>
    %211 = arith.mulf %186, %186 : vector<7x512xf32>
    %212 = arith.mulf %189, %189 : vector<7x512xf32>
    %213 = arith.addf %211, %212 : vector<7x512xf32>
    %214 = arith.mulf %192, %192 : vector<7x512xf32>
    %215 = arith.addf %213, %214 : vector<7x512xf32>
    %216 = arith.mulf %195, %195 : vector<7x512xf32>
    %217 = arith.mulf %198, %198 : vector<7x512xf32>
    %218 = arith.addf %216, %217 : vector<7x512xf32>
    %219 = arith.mulf %201, %201 : vector<7x512xf32>
    %220 = arith.addf %218, %219 : vector<7x512xf32>
    %221 = arith.mulf %204, %204 : vector<7x512xf32>
    %222 = arith.mulf %207, %207 : vector<7x512xf32>
    %223 = arith.addf %221, %222 : vector<7x512xf32>
    %224 = arith.mulf %210, %210 : vector<7x512xf32>
    %225 = arith.addf %223, %224 : vector<7x512xf32>
    %226 = arith.mulf %186, %195 : vector<7x512xf32>
    %227 = arith.mulf %189, %198 : vector<7x512xf32>
    %228 = arith.addf %226, %227 : vector<7x512xf32>
    %229 = arith.mulf %192, %201 : vector<7x512xf32>
    %230 = arith.addf %228, %229 : vector<7x512xf32>
    %231 = arith.mulf %215, %220 : vector<7x512xf32>
    %232 = math.rsqrt %231 : vector<7x512xf32>
    %233 = arith.mulf %230, %232 : vector<7x512xf32>
    %c53 = arith.constant 53 : index
    %c0_17 = arith.constant 0 : index
    %234 = vector.load %arg2[%c53, %c0_17] : memref<67x512xf32, #tpu.memory_space<vmem>>, vector<7x512xf32>
    tpu.vector_store %arg2[%c53, %c0_17], %233 {strides = array<i32>} : memref<67x512xf32, #tpu.memory_space<vmem>>, vector<7x512xf32>,
    %235 = arith.mulf %186, %204 : vector<7x512xf32>
    %236 = arith.mulf %189, %207 : vector<7x512xf32>
    %237 = arith.addf %235, %236 : vector<7x512xf32>
    %238 = arith.mulf %192, %210 : vector<7x512xf32>
    %239 = arith.addf %237, %238 : vector<7x512xf32>
    %240 = arith.mulf %215, %225 : vector<7x512xf32>
    %241 = math.rsqrt %240 : vector<7x512xf32>
    %242 = arith.mulf %239, %241 : vector<7x512xf32>
    %c60 = arith.constant 60 : index
    %c0_18 = arith.constant 0 : index
    %243 = vector.load %arg2[%c60, %c0_18] : memref<67x512xf32, #tpu.memory_space<vmem>>, vector<7x512xf32>
    tpu.vector_store %arg2[%c60, %c0_18], %242 {strides = array<i32>} : memref<67x512xf32, #tpu.memory_space<vmem>>, vector<7x512xf32>,
    return
  }
  func.func @transform_0(%arg0: i32) -> (i32, i32, i32) {
    %c0_i32 = arith.constant 0 : i32
    %c0_i32_0 = arith.constant 0 : i32
    %c0_i32_1 = arith.constant 0 : i32
    return %c0_i32, %c0_i32_0, %arg0 : i32, i32, i32
  }
  func.func @transform_1(%arg0: i32) -> (i32, i32) {
    %c0_i32 = arith.constant 0 : i32
    %c0_i32_0 = arith.constant 0 : i32
    return %c0_i32, %arg0 : i32, i32
  }
}

</mosaic_0001>

<llo_original>
// kernel: feature_old_forward.1
$region0: #{feature_old_forward.1}
  #allocation0 [shape = 'u32[]', space=smem, size = 0x4, offset = 0x4, fixed_abs, tag = 'smem constant byte address 0x4 - core index']
  #allocation1 [shape = 'u32[144,128]{1,0:T(1,128)}', space=vmem, size = 0x12000, scoped, tag = 'internal scratch']
  %s0 = inlined_call_operand.vmem [shape: f32[3,10,512], index: 0, kind: input, shape index: {}]
  %s1 = inlined_call_operand.vmem [shape: f32[67,512], index: 1, kind: output, shape index: {}]
  %s2 = sld [smem:[#allocation0]]
  $region14: #{feature_old_forward.1} parent=0
    _
  %s4 = ssub.s32 1, %s2
  %s5 = scalar_select 0, %s4, %s2
  // Predicated region
  $region2: #{feature_old_forward.1} parent=0 // pred_check
    _
  $region3: #{feature_old_forward.1} parent=0 // pred_check_branch
    %7 = sbr.rel (0) target = $region5
  $region4: #{feature_old_forward.1} parent=0 // pred_region
    _
  $region5: #{feature_old_forward.1} parent=0 // pred_fallthru
    _
  %v8 = vld [vmem:[%s0] sm:$0xff]
  %v9 = vld [vmem:[%s0 + $0x8] sm:$0xff]
  %v10 = vld [vmem:[%s0 + $0x10] sm:$0xff]
  %v11 = vld [vmem:[%s0 + $0x18] sm:$0xff]
  %v12 = vld [vmem:[%s0 + $0x20] sm:$0x3]
  %v13 = vld [vmem:[%s0 + $0x28] sm:$0x3]
  %v14 = vld [vmem:[%s0 + $0x30] sm:$0x3]
  %v15 = vld [vmem:[%s0 + $0x38] sm:$0x3]
  %s16 = scalar_lea.vmem %s0, 64
  %v17 = vld [vmem:[%s16] sm:$0xff]
  %v18 = vld [vmem:[%s16 + $0x8] sm:$0xff]
  %v19 = vld [vmem:[%s16 + $0x10] sm:$0xff]
  %v20 = vld [vmem:[%s16 + $0x18] sm:$0xff]
  %v21 = vld [vmem:[%s16 + $0x20] sm:$0x3]
  %v22 = vld [vmem:[%s16 + $0x28] sm:$0x3]
  %v23 = vld [vmem:[%s16 + $0x30] sm:$0x3]
  %v24 = vld [vmem:[%s16 + $0x38] sm:$0x3]
  %s25 = scalar_lea.vmem %s0, 128
  %v26 = vld [vmem:[%s25] sm:$0xff]
  %v27 = vld [vmem:[%s25 + $0x8] sm:$0xff]
  %v28 = vld [vmem:[%s25 + $0x10] sm:$0xff]
  %v29 = vld [vmem:[%s25 + $0x18] sm:$0xff]
  %v30 = vld [vmem:[%s25 + $0x20] sm:$0x3]
  %v31 = vld [vmem:[%s25 + $0x28] sm:$0x3]
  %v32 = vld [vmem:[%s25 + $0x30] sm:$0x3]
  %v33 = vld [vmem:[%s25 + $0x38] sm:$0x3]
  %vm42 = vcmask 1040384
  %v43 = vrot.slane %v8, 7
  %v44 = vrot.slane %v9, 7
  %v45 = vrot.slane %v10, 7
  %v46 = vrot.slane %v11, 7
  %v47 = vrot.slane %v12, 7
  %v48 = vsel %vm42, %v43, %v47
  %v49 = vrot.slane %v13, 7
  %v50 = vsel %vm42, %v44, %v49
  %v51 = vrot.slane %v14, 7
  %v52 = vsel %vm42, %v45, %v51
  %v53 = vrot.slane %v15, 7
  %v54 = vsel %vm42, %v46, %v53
  %v63 = vsub.f32 %v8, %v43
  %v64 = vsub.f32 %v9, %v44
  %v65 = vsub.f32 %v10, %v45
  %v66 = vsub.f32 %v11, %v46
  %v67 = vsub.f32 %v12, %v48
  %v68 = vsub.f32 %v13, %v50
  %v69 = vsub.f32 %v14, %v52
  %v70 = vsub.f32 %v15, %v54
  %v79 = vrot.slane %v17, 7
  %v80 = vrot.slane %v18, 7
  %v81 = vrot.slane %v19, 7
  %v82 = vrot.slane %v20, 7
  %v83 = vrot.slane %v21, 7
  %v84 = vsel %vm42, %v79, %v83
  %v85 = vrot.slane %v22, 7
  %v86 = vsel %vm42, %v80, %v85
  %v87 = vrot.slane %v23, 7
  %v88 = vsel %vm42, %v81, %v87
  %v89 = vrot.slane %v24, 7
  %v90 = vsel %vm42, %v82, %v89
  %v99 = vsub.f32 %v17, %v79
  %v100 = vsub.f32 %v18, %v80
  %v101 = vsub.f32 %v19, %v81
  %v102 = vsub.f32 %v20, %v82
  %v103 = vsub.f32 %v21, %v84
  %v104 = vsub.f32 %v22, %v86
  %v105 = vsub.f32 %v23, %v88
  %v106 = vsub.f32 %v24, %v90
  %v115 = vrot.slane %v26, 7
  %v116 = vrot.slane %v27, 7
  %v117 = vrot.slane %v28, 7
  %v118 = vrot.slane %v29, 7
  %v119 = vrot.slane %v30, 7
  %v120 = vsel %vm42, %v115, %v119
  %v121 = vrot.slane %v31, 7
  %v122 = vsel %vm42, %v116, %v121
  %v123 = vrot.slane %v32, 7
  %v124 = vsel %vm42, %v117, %v123
  %v125 = vrot.slane %v33, 7
  %v126 = vsel %vm42, %v118, %v125
  %v135 = vsub.f32 %v26, %v115
  %v136 = vsub.f32 %v27, %v116
  %v137 = vsub.f32 %v28, %v117
  %v138 = vsub.f32 %v29, %v118
  %v139 = vsub.f32 %v30, %v120
  %v140 = vsub.f32 %v31, %v122
  %v141 = vsub.f32 %v32, %v124
  %v142 = vsub.f32 %v33, %v126
  %v143 = vmul.f32 %v63, %v63
  %v144 = vmul.f32 %v64, %v64
  %v145 = vmul.f32 %v65, %v65
  %v146 = vmul.f32 %v66, %v66
  %v147 = vmul.f32 %v67, %v67
  %v148 = vmul.f32 %v68, %v68
  %v149 = vmul.f32 %v69, %v69
  %v150 = vmul.f32 %v70, %v70
  %v151 = vmul.f32 %v99, %v99
  %v152 = vmul.f32 %v100, %v100
  %v153 = vmul.f32 %v101, %v101
  %v154 = vmul.f32 %v102, %v102
  %v155 = vmul.f32 %v103, %v103
  %v156 = vmul.f32 %v104, %v104
  %v157 = vmul.f32 %v105, %v105
  %v158 = vmul.f32 %v106, %v106
  %v159 = vadd.f32 %v143, %v151
  %v160 = vadd.f32 %v144, %v152
  %v161 = vadd.f32 %v145, %v153
  %v162 = vadd.f32 %v146, %v154
  %v163 = vadd.f32 %v147, %v155
  %v164 = vadd.f32 %v148, %v156
  %v165 = vadd.f32 %v149, %v157
  %v166 = vadd.f32 %v150, %v158
  %v167 = vmul.f32 %v135, %v135
  %v168 = vmul.f32 %v136, %v136
  %v169 = vmul.f32 %v137, %v137
  %v170 = vmul.f32 %v138, %v138
  %v171 = vmul.f32 %v139, %v139
  %v172 = vmul.f32 %v140, %v140
  %v173 = vmul.f32 %v141, %v141
  %v174 = vmul.f32 %v142, %v142
  %v175 = vadd.f32 %v159, %v167
  %v176 = vadd.f32 %v160, %v168
  %v177 = vadd.f32 %v161, %v169
  %v178 = vadd.f32 %v162, %v170
  %v179 = vadd.f32 %v163, %v171
  %v180 = vadd.f32 %v164, %v172
  %v181 = vadd.f32 %v165, %v173
  %v182 = vadd.f32 %v166, %v174
  %v183 = vrsqrt.pop %v175
  %v184 = vmul.f32 %v175, %v183
  %vm185 = vcmp.eq.f32.partialorder %v175, inf
  %v186 = vsel %vm185, %v175, %v184
  %vm187 = vcmp.eq.f32.partialorder %v175, 0.0
  %v188 = vand.u32 %v175, 2147483648
  %v189 = vsel %vm187, %v188, %v186
  %v190 = vrsqrt.pop %v176
  %v191 = vmul.f32 %v176, %v190
  %vm192 = vcmp.eq.f32.partialorder %v176, inf
  %v193 = vsel %vm192, %v176, %v191
  %vm194 = vcmp.eq.f32.partialorder %v176, 0.0
  %v195 = vand.u32 %v176, 2147483648
  %v196 = vsel %vm194, %v195, %v193
  %v197 = vrsqrt.pop %v177
  %v198 = vmul.f32 %v177, %v197
  %vm199 = vcmp.eq.f32.partialorder %v177, inf
  %v200 = vsel %vm199, %v177, %v198
  %vm201 = vcmp.eq.f32.partialorder %v177, 0.0
  %v202 = vand.u32 %v177, 2147483648
  %v203 = vsel %vm201, %v202, %v200
  %v204 = vrsqrt.pop %v178
  %v205 = vmul.f32 %v178, %v204
  %vm206 = vcmp.eq.f32.partialorder %v178, inf
  %v207 = vsel %vm206, %v178, %v205
  %vm208 = vcmp.eq.f32.partialorder %v178, 0.0
  %v209 = vand.u32 %v178, 2147483648
  %v210 = vsel %vm208, %v209, %v207
  %v211 = vrsqrt.pop %v179
  %v212 = vmul.f32 %v179, %v211
  %vm213 = vcmp.eq.f32.partialorder %v179, inf
  %v214 = vsel %vm213, %v179, %v212
  %vm215 = vcmp.eq.f32.partialorder %v179, 0.0
  %v216 = vand.u32 %v179, 2147483648
  %v217 = vsel %vm215, %v216, %v214
  %v218 = vrsqrt.pop %v180
  %v219 = vmul.f32 %v180, %v218
  %vm220 = vcmp.eq.f32.partialorder %v180, inf
  %v221 = vsel %vm220, %v180, %v219
  %vm222 = vcmp.eq.f32.partialorder %v180, 0.0
  %v223 = vand.u32 %v180, 2147483648
  %v224 = vsel %vm222, %v223, %v221
  %v225 = vrsqrt.pop %v181
  %v226 = vmul.f32 %v181, %v225
  %vm227 = vcmp.eq.f32.partialorder %v181, inf
  %v228 = vsel %vm227, %v181, %v226
  %vm229 = vcmp.eq.f32.partialorder %v181, 0.0
  %v230 = vand.u32 %v181, 2147483648
  %v231 = vsel %vm229, %v230, %v228
  %v232 = vrsqrt.pop %v182
  %v233 = vmul.f32 %v182, %v232
  %vm234 = vcmp.eq.f32.partialorder %v182, inf
  %v235 = vsel %vm234, %v182, %v233
  %vm236 = vcmp.eq.f32.partialorder %v182, 0.0
  %v237 = vand.u32 %v182, 2147483648
  %v238 = vsel %vm236, %v237, %v235
  %vm247 = vcmask 1046528
  %v248 = vrot.slane %v189, 1
  %v249 = vrot.slane %v217, 1
  %v250 = vsel %vm247, %v248, %v249
  %v251 = vrot.slane %v196, 1
  %v252 = vrot.slane %v224, 1
  %v253 = vsel %vm247, %v251, %v252
  %v254 = vrot.slane %v203, 1
  %v255 = vrot.slane %v231, 1
  %v256 = vsel %vm247, %v254, %v255
  %v257 = vrot.slane %v210, 1
  %v258 = vrot.slane %v238, 1
  %v259 = vsel %vm247, %v257, %v258
  %268 = vst [vmem:[%s1] sm:$0xff] %v250
  %269 = vst [vmem:[%s1 + $0x8] sm:$0xff] %v253
  %270 = vst [vmem:[%s1 + $0x10] sm:$0xff] %v256
  %271 = vst [vmem:[%s1 + $0x18] sm:$0xff] %v259
  %272 = vst [vmem:[%s1 + $0x20] sm:$0x1] %v249
  %273 = vst [vmem:[%s1 + $0x28] sm:$0x1] %v252
  %274 = vst [vmem:[%s1 + $0x30] sm:$0x1] %v255
  %275 = vst [vmem:[%s1 + $0x38] sm:$0x1] %v258
  %v276 = vrot.slane %v8, 6
  %v277 = vrot.slane %v9, 6
  %v278 = vrot.slane %v10, 6
  %v279 = vrot.slane %v11, 6
  %v284 = vsub.f32 %v8, %v276
  %v285 = vsub.f32 %v9, %v277
  %v286 = vsub.f32 %v10, %v278
  %v287 = vsub.f32 %v11, %v279
  %v288 = vsub.f32 %v12, %v276
  %v289 = vsub.f32 %v13, %v277
  %v290 = vsub.f32 %v14, %v278
  %v291 = vsub.f32 %v15, %v279
  %v292 = vrot.slane %v17, 6
  %v293 = vrot.slane %v18, 6
  %v294 = vrot.slane %v19, 6
  %v295 = vrot.slane %v20, 6
  %v300 = vsub.f32 %v17, %v292
  %v301 = vsub.f32 %v18, %v293
  %v302 = vsub.f32 %v19, %v294
  %v303 = vsub.f32 %v20, %v295
  %v304 = vsub.f32 %v21, %v292
  %v305 = vsub.f32 %v22, %v293
  %v306 = vsub.f32 %v23, %v294
  %v307 = vsub.f32 %v24, %v295
  %v308 = vrot.slane %v26, 6
  %v309 = vrot.slane %v27, 6
  %v310 = vrot.slane %v28, 6
  %v311 = vrot.slane %v29, 6
  %v316 = vsub.f32 %v26, %v308
  %v317 = vsub.f32 %v27, %v309
  %v318 = vsub.f32 %v28, %v310
  %v319 = vsub.f32 %v29, %v311
  %v320 = vsub.f32 %v30, %v308
  %v321 = vsub.f32 %v31, %v309
  %v322 = vsub.f32 %v32, %v310
  %v323 = vsub.f32 %v33, %v311
  %v324 = vmul.f32 %v284, %v284
  %v325 = vmul.f32 %v285, %v285
  %v326 = vmul.f32 %v286, %v286
  %v327 = vmul.f32 %v287, %v287
  %v328 = vmul.f32 %v288, %v288
  %v329 = vmul.f32 %v289, %v289
  %v330 = vmul.f32 %v290, %v290
  %v331 = vmul.f32 %v291, %v291
  %v332 = vmul.f32 %v300, %v300
  %v333 = vmul.f32 %v301, %v301
  %v334 = vmul.f32 %v302, %v302
  %v335 = vmul.f32 %v303, %v303
  %v336 = vmul.f32 %v304, %v304
  %v337 = vmul.f32 %v305, %v305
  %v338 = vmul.f32 %v306, %v306
  %v339 = vmul.f32 %v307, %v307
  %v340 = vadd.f32 %v324, %v332
  %v341 = vadd.f32 %v325, %v333
  %v342 = vadd.f32 %v326, %v334
  %v343 = vadd.f32 %v327, %v335
  %v344 = vadd.f32 %v328, %v336
  %v345 = vadd.f32 %v329, %v337
  %v346 = vadd.f32 %v330, %v338
  %v347 = vadd.f32 %v331, %v339
  %v348 = vmul.f32 %v316, %v316
  %v349 = vmul.f32 %v317, %v317
  %v350 = vmul.f32 %v318, %v318
  %v351 = vmul.f32 %v319, %v319
  %v352 = vmul.f32 %v320, %v320
  %v353 = vmul.f32 %v321, %v321
  %v354 = vmul.f32 %v322, %v322
  %v355 = vmul.f32 %v323, %v323
  %v356 = vadd.f32 %v340, %v348
  %v357 = vadd.f32 %v341, %v349
  %v358 = vadd.f32 %v342, %v350
  %v359 = vadd.f32 %v343, %v351
  %v360 = vadd.f32 %v344, %v352
  %v361 = vadd.f32 %v345, %v353
  %v362 = vadd.f32 %v346, %v354
  %v363 = vadd.f32 %v347, %v355
  %v364 = vrsqrt.pop %v356
  %v365 = vmul.f32 %v356, %v364
  %vm366 = vcmp.eq.f32.partialorder %v356, inf
  %v367 = vsel %vm366, %v356, %v365
  %vm368 = vcmp.eq.f32.partialorder %v356, 0.0
  %v369 = vand.u32 %v356, 2147483648
  %v370 = vsel %vm368, %v369, %v367
  %v371 = vrsqrt.pop %v357
  %v372 = vmul.f32 %v357, %v371
  %vm373 = vcmp.eq.f32.partialorder %v357, inf
  %v374 = vsel %vm373, %v357, %v372
  %vm375 = vcmp.eq.f32.partialorder %v357, 0.0
  %v376 = vand.u32 %v357, 2147483648
  %v377 = vsel %vm375, %v376, %v374
  %v378 = vrsqrt.pop %v358
  %v379 = vmul.f32 %v358, %v378
  %vm380 = vcmp.eq.f32.partialorder %v358, inf
  %v381 = vsel %vm380, %v358, %v379
  %vm382 = vcmp.eq.f32.partialorder %v358, 0.0
  %v383 = vand.u32 %v358, 2147483648
  %v384 = vsel %vm382, %v383, %v381
  %v385 = vrsqrt.pop %v359
  %v386 = vmul.f32 %v359, %v385
  %vm387 = vcmp.eq.f32.partialorder %v359, inf
  %v388 = vsel %vm387, %v359, %v386
  %vm389 = vcmp.eq.f32.partialorder %v359, 0.0
  %v390 = vand.u32 %v359, 2147483648
  %v391 = vsel %vm389, %v390, %v388
  %v392 = vrsqrt.pop %v360
  %v393 = vmul.f32 %v360, %v392
  %vm394 = vcmp.eq.f32.partialorder %v360, inf
  %v395 = vsel %vm394, %v360, %v393
  %vm396 = vcmp.eq.f32.partialorder %v360, 0.0
  %v397 = vand.u32 %v360, 2147483648
  %v398 = vsel %vm396, %v397, %v395
  %v399 = vrsqrt.pop %v361
  %v400 = vmul.f32 %v361, %v399
  %vm401 = vcmp.eq.f32.partialorder %v361, inf
  %v402 = vsel %vm401, %v361, %v400
  %vm403 = vcmp.eq.f32.partialorder %v361, 0.0
  %v404 = vand.u32 %v361, 2147483648
  %v405 = vsel %vm403, %v404, %v402
  %v406 = vrsqrt.pop %v362
  %v407 = vmul.f32 %v362, %v406
  %vm408 = vcmp.eq.f32.partialorder %v362, inf
  %v409 = vsel %vm408, %v362, %v407
  %vm410 = vcmp.eq.f32.partialorder %v362, 0.0
  %v411 = vand.u32 %v362, 2147483648
  %v412 = vsel %vm410, %v411, %v409
  %v413 = vrsqrt.pop %v363
  %v414 = vmul.f32 %v363, %v413
  %vm415 = vcmp.eq.f32.partialorder %v363, inf
  %v416 = vsel %vm415, %v363, %v414
  %vm417 = vcmp.eq.f32.partialorder %v363, 0.0
  %v418 = vand.u32 %v363, 2147483648
  %v419 = vsel %vm417, %v418, %v416
  %v428 = vrot.slane %v370, 1
  %v429 = vrot.slane %v398, 1
  %v430 = vsel %vm247, %v428, %v429
  %v431 = vrot.slane %v377, 1
  %v432 = vrot.slane %v405, 1
  %v433 = vsel %vm247, %v431, %v432
  %v434 = vrot.slane %v384, 1
  %v435 = vrot.slane %v412, 1
  %v436 = vsel %vm247, %v434, %v435
  %v437 = vrot.slane %v391, 1
  %v438 = vrot.slane %v419, 1
  %v439 = vsel %vm247, %v437, %v438
  %448 = vst [vmem:[%s1 + $0x20] sm:$0xfe] %v430
  %449 = vst [vmem:[%s1 + $0x28] sm:$0xfe] %v433
  %450 = vst [vmem:[%s1 + $0x30] sm:$0xfe] %v436
  %451 = vst [vmem:[%s1 + $0x38] sm:$0xfe] %v439
  %452 = vst [vmem:[%s1 + $0x40] sm:$0x1] %v429
  %453 = vst [vmem:[%s1 + $0x48] sm:$0x1] %v432
  %454 = vst [vmem:[%s1 + $0x50] sm:$0x1] %v435
  %455 = vst [vmem:[%s1 + $0x58] sm:$0x1] %v438
  %v456 = vrot.slane %v8, 5
  %v457 = vrot.slane %v9, 5
  %v458 = vrot.slane %v10, 5
  %v459 = vrot.slane %v11, 5
  %v464 = vsub.f32 %v8, %v456
  %v465 = vsub.f32 %v9, %v457
  %v466 = vsub.f32 %v10, %v458
  %v467 = vsub.f32 %v11, %v459
  %v468 = vsub.f32 %v12, %v456
  %v469 = vsub.f32 %v13, %v457
  %v470 = vsub.f32 %v14, %v458
  %v471 = vsub.f32 %v15, %v459
  %v472 = vrot.slane %v17, 5
  %v473 = vrot.slane %v18, 5
  %v474 = vrot.slane %v19, 5
  %v475 = vrot.slane %v20, 5
  %v480 = vsub.f32 %v17, %v472
  %v481 = vsub.f32 %v18, %v473
  %v482 = vsub.f32 %v19, %v474
  %v483 = vsub.f32 %v20, %v475
  %v484 = vsub.f32 %v21, %v472
  %v485 = vsub.f32 %v22, %v473
  %v486 = vsub.f32 %v23, %v474
  %v487 = vsub.f32 %v24, %v475
  %v488 = vrot.slane %v26, 5
  %v489 = vrot.slane %v27, 5
  %v490 = vrot.slane %v28, 5
  %v491 = vrot.slane %v29, 5
  %v496 = vsub.f32 %v26, %v488
  %v497 = vsub.f32 %v27, %v489
  %v498 = vsub.f32 %v28, %v490
  %v499 = vsub.f32 %v29, %v491
  %v500 = vsub.f32 %v30, %v488
  %v501 = vsub.f32 %v31, %v489
  %v502 = vsub.f32 %v32, %v490
  %v503 = vsub.f32 %v33, %v491
  %v504 = vmul.f32 %v464, %v464
  %v505 = vmul.f32 %v465, %v465
  %v506 = vmul.f32 %v466, %v466
  %v507 = vmul.f32 %v467, %v467
  %v508 = vmul.f32 %v468, %v468
  %v509 = vmul.f32 %v469, %v469
  %v510 = vmul.f32 %v470, %v470
  %v511 = vmul.f32 %v471, %v471
  %v512 = vmul.f32 %v480, %v480
  %v513 = vmul.f32 %v481, %v481
  %v514 = vmul.f32 %v482, %v482
  %v515 = vmul.f32 %v483, %v483
  %v516 = vmul.f32 %v484, %v484
  %v517 = vmul.f32 %v485, %v485
  %v518 = vmul.f32 %v486, %v486
  %v519 = vmul.f32 %v487, %v487
  %v520 = vadd.f32 %v504, %v512
  %v521 = vadd.f32 %v505, %v513
  %v522 = vadd.f32 %v506, %v514
  %v523 = vadd.f32 %v507, %v515
  %v524 = vadd.f32 %v508, %v516
  %v525 = vadd.f32 %v509, %v517
  %v526 = vadd.f32 %v510, %v518
  %v527 = vadd.f32 %v511, %v519
  %v528 = vmul.f32 %v496, %v496
  %v529 = vmul.f32 %v497, %v497
  %v530 = vmul.f32 %v498, %v498
  %v531 = vmul.f32 %v499, %v499
  %v532 = vmul.f32 %v500, %v500
  %v533 = vmul.f32 %v501, %v501
  %v534 = vmul.f32 %v502, %v502
  %v535 = vmul.f32 %v503, %v503
  %v536 = vadd.f32 %v520, %v528
  %v537 = vadd.f32 %v521, %v529
  %v538 = vadd.f32 %v522, %v530
  %v539 = vadd.f32 %v523, %v531
  %v540 = vadd.f32 %v524, %v532
  %v541 = vadd.f32 %v525, %v533
  %v542 = vadd.f32 %v526, %v534
  %v543 = vadd.f32 %v527, %v535
  %v544 = vrsqrt.pop %v536
  %v545 = vmul.f32 %v536, %v544
  %vm546 = vcmp.eq.f32.partialorder %v536, inf
  %v547 = vsel %vm546, %v536, %v545
  %vm548 = vcmp.eq.f32.partialorder %v536, 0.0
  %v549 = vand.u32 %v536, 2147483648
  %v550 = vsel %vm548, %v549, %v547
  %v551 = vrsqrt.pop %v537
  %v552 = vmul.f32 %v537, %v551
  %vm553 = vcmp.eq.f32.partialorder %v537, inf
  %v554 = vsel %vm553, %v537, %v552
  %vm555 = vcmp.eq.f32.partialorder %v537, 0.0
  %v556 = vand.u32 %v537, 2147483648
  %v557 = vsel %vm555, %v556, %v554
  %v558 = vrsqrt.pop %v538
  %v559 = vmul.f32 %v538, %v558
  %vm560 = vcmp.eq.f32.partialorder %v538, inf
  %v561 = vsel %vm560, %v538, %v559
  %vm562 = vcmp.eq.f32.partialorder %v538, 0.0
  %v563 = vand.u32 %v538, 2147483648
  %v564 = vsel %vm562, %v563, %v561
  %v565 = vrsqrt.pop %v539
  %v566 = vmul.f32 %v539, %v565
  %vm567 = vcmp.eq.f32.partialorder %v539, inf
  %v568 = vsel %vm567, %v539, %v566
  %vm569 = vcmp.eq.f32.partialorder %v539, 0.0
  %v570 = vand.u32 %v539, 2147483648
  %v571 = vsel %vm569, %v570, %v568
  %v572 = vrsqrt.pop %v540
  %v573 = vmul.f32 %v540, %v572
  %vm574 = vcmp.eq.f32.partialorder %v540, inf
  %v575 = vsel %vm574, %v540, %v573
  %vm576 = vcmp.eq.f32.partialorder %v540, 0.0
  %v577 = vand.u32 %v540, 2147483648
  %v578 = vsel %vm576, %v577, %v575
  %v579 = vrsqrt.pop %v541
  %v580 = vmul.f32 %v541, %v579
  %vm581 = vcmp.eq.f32.partialorder %v541, inf
  %v582 = vsel %vm581, %v541, %v580
  %vm583 = vcmp.eq.f32.partialorder %v541, 0.0
  %v584 = vand.u32 %v541, 2147483648
  %v585 = vsel %vm583, %v584, %v582
  %v586 = vrsqrt.pop %v542
  %v587 = vmul.f32 %v542, %v586
  %vm588 = vcmp.eq.f32.partialorder %v542, inf
  %v589 = vsel %vm588, %v542, %v587
  %vm590 = vcmp.eq.f32.partialorder %v542, 0.0
  %v591 = vand.u32 %v542, 2147483648
  %v592 = vsel %vm590, %v591, %v589
  %v593 = vrsqrt.pop %v543
  %v594 = vmul.f32 %v543, %v593
  %vm595 = vcmp.eq.f32.partialorder %v543, inf
  %v596 = vsel %vm595, %v543, %v594
  %vm597 = vcmp.eq.f32.partialorder %v543, 0.0
  %v598 = vand.u32 %v543, 2147483648
  %v599 = vsel %vm597, %v598, %v596
  %vm608 = vcmask 1045504
  %v609 = vrot.slane %v550, 2
  %v610 = vrot.slane %v578, 2
  %v611 = vsel %vm608, %v609, %v610
  %v612 = vrot.slane %v557, 2
  %v613 = vrot.slane %v585, 2
  %v614 = vsel %vm608, %v612, %v613
  %v615 = vrot.slane %v564, 2
  %v616 = vrot.slane %v592, 2
  %v617 = vsel %vm608, %v615, %v616
  %v618 = vrot.slane %v571, 2
  %v619 = vrot.slane %v599, 2
  %v620 = vsel %vm608, %v618, %v619
  %625 = vst [vmem:[%s1 + $0x40] sm:$0xfe] %v611
  %626 = vst [vmem:[%s1 + $0x48] sm:$0xfe] %v614
  %627 = vst [vmem:[%s1 + $0x50] sm:$0xfe] %v617
  %628 = vst [vmem:[%s1 + $0x58] sm:$0xfe] %v620
  %v629 = vrot.slane %v8, 4
  %v630 = vrot.slane %v9, 4
  %v631 = vrot.slane %v10, 4
  %v632 = vrot.slane %v11, 4
  %v637 = vsub.f32 %v8, %v629
  %v638 = vsub.f32 %v9, %v630
  %v639 = vsub.f32 %v10, %v631
  %v640 = vsub.f32 %v11, %v632
  %v641 = vsub.f32 %v12, %v629
  %v642 = vsub.f32 %v13, %v630
  %v643 = vsub.f32 %v14, %v631
  %v644 = vsub.f32 %v15, %v632
  %v645 = vrot.slane %v17, 4
  %v646 = vrot.slane %v18, 4
  %v647 = vrot.slane %v19, 4
  %v648 = vrot.slane %v20, 4
  %v653 = vsub.f32 %v17, %v645
  %v654 = vsub.f32 %v18, %v646
  %v655 = vsub.f32 %v19, %v647
  %v656 = vsub.f32 %v20, %v648
  %v657 = vsub.f32 %v21, %v645
  %v658 = vsub.f32 %v22, %v646
  %v659 = vsub.f32 %v23, %v647
  %v660 = vsub.f32 %v24, %v648
  %v661 = vrot.slane %v26, 4
  %v662 = vrot.slane %v27, 4
  %v663 = vrot.slane %v28, 4
  %v664 = vrot.slane %v29, 4
  %v669 = vsub.f32 %v26, %v661
  %v670 = vsub.f32 %v27, %v662
  %v671 = vsub.f32 %v28, %v663
  %v672 = vsub.f32 %v29, %v664
  %v673 = vsub.f32 %v30, %v661
  %v674 = vsub.f32 %v31, %v662
  %v675 = vsub.f32 %v32, %v663
  %v676 = vsub.f32 %v33, %v664
  %v677 = vmul.f32 %v637, %v637
  %v678 = vmul.f32 %v638, %v638
  %v679 = vmul.f32 %v639, %v639
  %v680 = vmul.f32 %v640, %v640
  %v681 = vmul.f32 %v641, %v641
  %v682 = vmul.f32 %v642, %v642
  %v683 = vmul.f32 %v643, %v643
  %v684 = vmul.f32 %v644, %v644
  %v685 = vmul.f32 %v653, %v653
  %v686 = vmul.f32 %v654, %v654
  %v687 = vmul.f32 %v655, %v655
  %v688 = vmul.f32 %v656, %v656
  %v689 = vmul.f32 %v657, %v657
  %v690 = vmul.f32 %v658, %v658
  %v691 = vmul.f32 %v659, %v659
  %v692 = vmul.f32 %v660, %v660
  %v693 = vadd.f32 %v677, %v685
  %v694 = vadd.f32 %v678, %v686
  %v695 = vadd.f32 %v679, %v687
  %v696 = vadd.f32 %v680, %v688
  %v697 = vadd.f32 %v681, %v689
  %v698 = vadd.f32 %v682, %v690
  %v699 = vadd.f32 %v683, %v691
  %v700 = vadd.f32 %v684, %v692
  %v701 = vmul.f32 %v669, %v669
  %v702 = vmul.f32 %v670, %v670
  %v703 = vmul.f32 %v671, %v671
  %v704 = vmul.f32 %v672, %v672
  %v705 = vmul.f32 %v673, %v673
  %v706 = vmul.f32 %v674, %v674
  %v707 = vmul.f32 %v675, %v675
  %v708 = vmul.f32 %v676, %v676
  %v709 = vadd.f32 %v693, %v701
  %v710 = vadd.f32 %v694, %v702
  %v711 = vadd.f32 %v695, %v703
  %v712 = vadd.f32 %v696, %v704
  %v713 = vadd.f32 %v697, %v705
  %v714 = vadd.f32 %v698, %v706
  %v715 = vadd.f32 %v699, %v707
  %v716 = vadd.f32 %v700, %v708
  %v717 = vrsqrt.pop %v709
  %v718 = vmul.f32 %v709, %v717
  %vm719 = vcmp.eq.f32.partialorder %v709, inf
  %v720 = vsel %vm719, %v709, %v718
  %vm721 = vcmp.eq.f32.partialorder %v709, 0.0
  %v722 = vand.u32 %v709, 2147483648
  %v723 = vsel %vm721, %v722, %v720
  %v724 = vrsqrt.pop %v710
  %v725 = vmul.f32 %v710, %v724
  %vm726 = vcmp.eq.f32.partialorder %v710, inf
  %v727 = vsel %vm726, %v710, %v725
  %vm728 = vcmp.eq.f32.partialorder %v710, 0.0
  %v729 = vand.u32 %v710, 2147483648
  %v730 = vsel %vm728, %v729, %v727
  %v731 = vrsqrt.pop %v711
  %v732 = vmul.f32 %v711, %v731
  %vm733 = vcmp.eq.f32.partialorder %v711, inf
  %v734 = vsel %vm733, %v711, %v732
  %vm735 = vcmp.eq.f32.partialorder %v711, 0.0
  %v736 = vand.u32 %v711, 2147483648
  %v737 = vsel %vm735, %v736, %v734
  %v738 = vrsqrt.pop %v712
  %v739 = vmul.f32 %v712, %v738
  %vm740 = vcmp.eq.f32.partialorder %v712, inf
  %v741 = vsel %vm740, %v712, %v739
  %vm742 = vcmp.eq.f32.partialorder %v712, 0.0
  %v743 = vand.u32 %v712, 2147483648
  %v744 = vsel %vm742, %v743, %v741
  %v745 = vrsqrt.pop %v713
  %v746 = vmul.f32 %v713, %v745
  %vm747 = vcmp.eq.f32.partialorder %v713, inf
  %v748 = vsel %vm747, %v713, %v746
  %vm749 = vcmp.eq.f32.partialorder %v713, 0.0
  %v750 = vand.u32 %v713, 2147483648
  %v751 = vsel %vm749, %v750, %v748
  %v752 = vrsqrt.pop %v714
  %v753 = vmul.f32 %v714, %v752
  %vm754 = vcmp.eq.f32.partialorder %v714, inf
  %v755 = vsel %vm754, %v714, %v753
  %vm756 = vcmp.eq.f32.partialorder %v714, 0.0
  %v757 = vand.u32 %v714, 2147483648
  %v758 = vsel %vm756, %v757, %v755
  %v759 = vrsqrt.pop %v715
  %v760 = vmul.f32 %v715, %v759
  %vm761 = vcmp.eq.f32.partialorder %v715, inf
  %v762 = vsel %vm761, %v715, %v760
  %vm763 = vcmp.eq.f32.partialorder %v715, 0.0
  %v764 = vand.u32 %v715, 2147483648
  %v765 = vsel %vm763, %v764, %v762
  %v766 = vrsqrt.pop %v716
  %v767 = vmul.f32 %v716, %v766
  %vm768 = vcmp.eq.f32.partialorder %v716, inf
  %v769 = vsel %vm768, %v716, %v767
  %vm770 = vcmp.eq.f32.partialorder %v716, 0.0
  %v771 = vand.u32 %v716, 2147483648
  %v772 = vsel %vm770, %v771, %v769
  %vm781 = vcmask 1043456
  %v782 = vrot.slane %v723, 4
  %v783 = vrot.slane %v751, 4
  %v784 = vsel %vm781, %v782, %v783
  %v785 = vrot.slane %v730, 4
  %v786 = vrot.slane %v758, 4
  %v787 = vsel %vm781, %v785, %v786
  %v788 = vrot.slane %v737, 4
  %v789 = vrot.slane %v765, 4
  %v790 = vsel %vm781, %v788, %v789
  %v791 = vrot.slane %v744, 4
  %v792 = vrot.slane %v772, 4
  %v793 = vsel %vm781, %v791, %v792
  %798 = vst [vmem:[%s1 + $0x60] sm:$0x3f] %v784
  %799 = vst [vmem:[%s1 + $0x68] sm:$0x3f] %v787
  %800 = vst [vmem:[%s1 + $0x70] sm:$0x3f] %v790
  %801 = vst [vmem:[%s1 + $0x78] sm:$0x3f] %v793
  %v802 = vrot.slane %v8, 3
  %v803 = vrot.slane %v9, 3
  %v804 = vrot.slane %v10, 3
  %v805 = vrot.slane %v11, 3
  %v810 = vsub.f32 %v8, %v802
  %v811 = vsub.f32 %v9, %v803
  %v812 = vsub.f32 %v10, %v804
  %v813 = vsub.f32 %v11, %v805
  %v814 = vsub.f32 %v12, %v802
  %v815 = vsub.f32 %v13, %v803
  %v816 = vsub.f32 %v14, %v804
  %v817 = vsub.f32 %v15, %v805
  %v818 = vrot.slane %v17, 3
  %v819 = vrot.slane %v18, 3
  %v820 = vrot.slane %v19, 3
  %v821 = vrot.slane %v20, 3
  %v826 = vsub.f32 %v17, %v818
  %v827 = vsub.f32 %v18, %v819
  %v828 = vsub.f32 %v19, %v820
  %v829 = vsub.f32 %v20, %v821
  %v830 = vsub.f32 %v21, %v818
  %v831 = vsub.f32 %v22, %v819
  %v832 = vsub.f32 %v23, %v820
  %v833 = vsub.f32 %v24, %v821
  %v834 = vrot.slane %v26, 3
  %v835 = vrot.slane %v27, 3
  %v836 = vrot.slane %v28, 3
  %v837 = vrot.slane %v29, 3
  %v842 = vsub.f32 %v26, %v834
  %v843 = vsub.f32 %v27, %v835
  %v844 = vsub.f32 %v28, %v836
  %v845 = vsub.f32 %v29, %v837
  %v846 = vsub.f32 %v30, %v834
  %v847 = vsub.f32 %v31, %v835
  %v848 = vsub.f32 %v32, %v836
  %v849 = vsub.f32 %v33, %v837
  %v850 = vmul.f32 %v810, %v810
  %v851 = vmul.f32 %v811, %v811
  %v852 = vmul.f32 %v812, %v812
  %v853 = vmul.f32 %v813, %v813
  %v854 = vmul.f32 %v814, %v814
  %v855 = vmul.f32 %v815, %v815
  %v856 = vmul.f32 %v816, %v816
  %v857 = vmul.f32 %v817, %v817
  %v858 = vmul.f32 %v826, %v826
  %v859 = vmul.f32 %v827, %v827
  %v860 = vmul.f32 %v828, %v828
  %v861 = vmul.f32 %v829, %v829
  %v862 = vmul.f32 %v830, %v830
  %v863 = vmul.f32 %v831, %v831
  %v864 = vmul.f32 %v832, %v832
  %v865 = vmul.f32 %v833, %v833
  %v866 = vadd.f32 %v850, %v858
  %v867 = vadd.f32 %v851, %v859
  %v868 = vadd.f32 %v852, %v860
  %v869 = vadd.f32 %v853, %v861
  %v870 = vadd.f32 %v854, %v862
  %v871 = vadd.f32 %v855, %v863
  %v872 = vadd.f32 %v856, %v864
  %v873 = vadd.f32 %v857, %v865
  %v874 = vmul.f32 %v842, %v842
  %v875 = vmul.f32 %v843, %v843
  %v876 = vmul.f32 %v844, %v844
  %v877 = vmul.f32 %v845, %v845
  %v878 = vmul.f32 %v846, %v846
  %v879 = vmul.f32 %v847, %v847
  %v880 = vmul.f32 %v848, %v848
  %v881 = vmul.f32 %v849, %v849
  %v882 = vadd.f32 %v866, %v874
  %v883 = vadd.f32 %v867, %v875
  %v884 = vadd.f32 %v868, %v876
  %v885 = vadd.f32 %v869, %v877
  %v886 = vadd.f32 %v870, %v878
  %v887 = vadd.f32 %v871, %v879
  %v888 = vadd.f32 %v872, %v880
  %v889 = vadd.f32 %v873, %v881
  %v890 = vrsqrt.pop %v882
  %v891 = vmul.f32 %v882, %v890
  %vm892 = vcmp.eq.f32.partialorder %v882, inf
  %v893 = vsel %vm892, %v882, %v891
  %vm894 = vcmp.eq.f32.partialorder %v882, 0.0
  %v895 = vand.u32 %v882, 2147483648
  %v896 = vsel %vm894, %v895, %v893
  %v897 = vrsqrt.pop %v883
  %v898 = vmul.f32 %v883, %v897
  %vm899 = vcmp.eq.f32.partialorder %v883, inf
  %v900 = vsel %vm899, %v883, %v898
  %vm901 = vcmp.eq.f32.partialorder %v883, 0.0
  %v902 = vand.u32 %v883, 2147483648
  %v903 = vsel %vm901, %v902, %v900
  %v904 = vrsqrt.pop %v884
  %v905 = vmul.f32 %v884, %v904
  %vm906 = vcmp.eq.f32.partialorder %v884, inf
  %v907 = vsel %vm906, %v884, %v905
  %vm908 = vcmp.eq.f32.partialorder %v884, 0.0
  %v909 = vand.u32 %v884, 2147483648
  %v910 = vsel %vm908, %v909, %v907
  %v911 = vrsqrt.pop %v885
  %v912 = vmul.f32 %v885, %v911
  %vm913 = vcmp.eq.f32.partialorder %v885, inf
  %v914 = vsel %vm913, %v885, %v912
  %vm915 = vcmp.eq.f32.partialorder %v885, 0.0
  %v916 = vand.u32 %v885, 2147483648
  %v917 = vsel %vm915, %v916, %v914
  %v918 = vrsqrt.pop %v886
  %v919 = vmul.f32 %v886, %v918
  %vm920 = vcmp.eq.f32.partialorder %v886, inf
  %v921 = vsel %vm920, %v886, %v919
  %vm922 = vcmp.eq.f32.partialorder %v886, 0.0
  %v923 = vand.u32 %v886, 2147483648
  %v924 = vsel %vm922, %v923, %v921
  %v925 = vrsqrt.pop %v887
  %v926 = vmul.f32 %v887, %v925
  %vm927 = vcmp.eq.f32.partialorder %v887, inf
  %v928 = vsel %vm927, %v887, %v926
  %vm929 = vcmp.eq.f32.partialorder %v887, 0.0
  %v930 = vand.u32 %v887, 2147483648
  %v931 = vsel %vm929, %v930, %v928
  %v932 = vrsqrt.pop %v888
  %v933 = vmul.f32 %v888, %v932
  %vm934 = vcmp.eq.f32.partialorder %v888, inf
  %v935 = vsel %vm934, %v888, %v933
  %vm936 = vcmp.eq.f32.partialorder %v888, 0.0
  %v937 = vand.u32 %v888, 2147483648
  %v938 = vsel %vm936, %v937, %v935
  %v939 = vrsqrt.pop %v889
  %v940 = vmul.f32 %v889, %v939
  %vm941 = vcmp.eq.f32.partialorder %v889, inf
  %v942 = vsel %vm941, %v889, %v940
  %vm943 = vcmp.eq.f32.partialorder %v889, 0.0
  %v944 = vand.u32 %v889, 2147483648
  %v945 = vsel %vm943, %v944, %v942
  %v954 = vrot.slane %v896, 7
  %v955 = vrot.slane %v903, 7
  %v956 = vrot.slane %v910, 7
  %v957 = vrot.slane %v917, 7
  %v958 = vrot.slane %v924, 7
  %v959 = vsel %vm42, %v954, %v958
  %v960 = vrot.slane %v931, 7
  %v961 = vsel %vm42, %v955, %v960
  %v962 = vrot.slane %v938, 7
  %v963 = vsel %vm42, %v956, %v962
  %v964 = vrot.slane %v945, 7
  %v965 = vsel %vm42, %v957, %v964
  %974 = vst [vmem:[%s1 + $0x60] sm:$0xc0] %v954
  %975 = vst [vmem:[%s1 + $0x68] sm:$0xc0] %v955
  %976 = vst [vmem:[%s1 + $0x70] sm:$0xc0] %v956
  %977 = vst [vmem:[%s1 + $0x78] sm:$0xc0] %v957
  %978 = vst [vmem:[%s1 + $0x80] sm:$0x7] %v959
  %979 = vst [vmem:[%s1 + $0x88] sm:$0x7] %v961
  %980 = vst [vmem:[%s1 + $0x90] sm:$0x7] %v963
  %981 = vst [vmem:[%s1 + $0x98] sm:$0x7] %v965
  %v982 = vrot.slane %v8, 2
  %v983 = vrot.slane %v9, 2
  %v984 = vrot.slane %v10, 2
  %v985 = vrot.slane %v11, 2
  %v990 = vsub.f32 %v8, %v982
  %v991 = vsub.f32 %v9, %v983
  %v992 = vsub.f32 %v10, %v984
  %v993 = vsub.f32 %v11, %v985
  %v994 = vsub.f32 %v12, %v982
  %v995 = vsub.f32 %v13, %v983
  %v996 = vsub.f32 %v14, %v984
  %v997 = vsub.f32 %v15, %v985
  %v998 = vrot.slane %v17, 2
  %v999 = vrot.slane %v18, 2
  %v1000 = vrot.slane %v19, 2
  %v1001 = vrot.slane %v20, 2
  %v1006 = vsub.f32 %v17, %v998
  %v1007 = vsub.f32 %v18, %v999
  %v1008 = vsub.f32 %v19, %v1000
  %v1009 = vsub.f32 %v20, %v1001
  %v1010 = vsub.f32 %v21, %v998
  %v1011 = vsub.f32 %v22, %v999
  %v1012 = vsub.f32 %v23, %v1000
  %v1013 = vsub.f32 %v24, %v1001
  %v1014 = vrot.slane %v26, 2
  %v1015 = vrot.slane %v27, 2
  %v1016 = vrot.slane %v28, 2
  %v1017 = vrot.slane %v29, 2
  %v1022 = vsub.f32 %v26, %v1014
  %v1023 = vsub.f32 %v27, %v1015
  %v1024 = vsub.f32 %v28, %v1016
  %v1025 = vsub.f32 %v29, %v1017
  %v1026 = vsub.f32 %v30, %v1014
  %v1027 = vsub.f32 %v31, %v1015
  %v1028 = vsub.f32 %v32, %v1016
  %v1029 = vsub.f32 %v33, %v1017
  %v1030 = vmul.f32 %v990, %v990
  %v1031 = vmul.f32 %v991, %v991
  %v1032 = vmul.f32 %v992, %v992
  %v1033 = vmul.f32 %v993, %v993
  %v1034 = vmul.f32 %v994, %v994
  %v1035 = vmul.f32 %v995, %v995
  %v1036 = vmul.f32 %v996, %v996
  %v1037 = vmul.f32 %v997, %v997
  %v1038 = vmul.f32 %v1006, %v1006
  %v1039 = vmul.f32 %v1007, %v1007
  %v1040 = vmul.f32 %v1008, %v1008
  %v1041 = vmul.f32 %v1009, %v1009
  %v1042 = vmul.f32 %v1010, %v1010
  %v1043 = vmul.f32 %v1011, %v1011
  %v1044 = vmul.f32 %v1012, %v1012
  %v1045 = vmul.f32 %v1013, %v1013
  %v1046 = vadd.f32 %v1030, %v1038
  %v1047 = vadd.f32 %v1031, %v1039
  %v1048 = vadd.f32 %v1032, %v1040
  %v1049 = vadd.f32 %v1033, %v1041
  %v1050 = vadd.f32 %v1034, %v1042
  %v1051 = vadd.f32 %v1035, %v1043
  %v1052 = vadd.f32 %v1036, %v1044
  %v1053 = vadd.f32 %v1037, %v1045
  %v1054 = vmul.f32 %v1022, %v1022
  %v1055 = vmul.f32 %v1023, %v1023
  %v1056 = vmul.f32 %v1024, %v1024
  %v1057 = vmul.f32 %v1025, %v1025
  %v1058 = vmul.f32 %v1026, %v1026
  %v1059 = vmul.f32 %v1027, %v1027
  %v1060 = vmul.f32 %v1028, %v1028
  %v1061 = vmul.f32 %v1029, %v1029
  %v1062 = vadd.f32 %v1046, %v1054
  %v1063 = vadd.f32 %v1047, %v1055
  %v1064 = vadd.f32 %v1048, %v1056
  %v1065 = vadd.f32 %v1049, %v1057
  %v1066 = vadd.f32 %v1050, %v1058
  %v1067 = vadd.f32 %v1051, %v1059
  %v1068 = vadd.f32 %v1052, %v1060
  %v1069 = vadd.f32 %v1053, %v1061
  %v1070 = vrsqrt.pop %v1062
  %v1071 = vmul.f32 %v1062, %v1070
  %vm1072 = vcmp.eq.f32.partialorder %v1062, inf
  %v1073 = vsel %vm1072, %v1062, %v1071
  %vm1074 = vcmp.eq.f32.partialorder %v1062, 0.0
  %v1075 = vand.u32 %v1062, 2147483648
  %v1076 = vsel %vm1074, %v1075, %v1073
  %v1077 = vrsqrt.pop %v1063
  %v1078 = vmul.f32 %v1063, %v1077
  %vm1079 = vcmp.eq.f32.partialorder %v1063, inf
  %v1080 = vsel %vm1079, %v1063, %v1078
  %vm1081 = vcmp.eq.f32.partialorder %v1063, 0.0
  %v1082 = vand.u32 %v1063, 2147483648
  %v1083 = vsel %vm1081, %v1082, %v1080
  %v1084 = vrsqrt.pop %v1064
  %v1085 = vmul.f32 %v1064, %v1084
  %vm1086 = vcmp.eq.f32.partialorder %v1064, inf
  %v1087 = vsel %vm1086, %v1064, %v1085
  %vm1088 = vcmp.eq.f32.partialorder %v1064, 0.0
  %v1089 = vand.u32 %v1064, 2147483648
  %v1090 = vsel %vm1088, %v1089, %v1087
  %v1091 = vrsqrt.pop %v1065
  %v1092 = vmul.f32 %v1065, %v1091
  %vm1093 = vcmp.eq.f32.partialorder %v1065, inf
  %v1094 = vsel %vm1093, %v1065, %v1092
  %vm1095 = vcmp.eq.f32.partialorder %v1065, 0.0
  %v1096 = vand.u32 %v1065, 2147483648
  %v1097 = vsel %vm1095, %v1096, %v1094
  %v1098 = vrsqrt.pop %v1066
  %v1099 = vmul.f32 %v1066, %v1098
  %vm1100 = vcmp.eq.f32.partialorder %v1066, inf
  %v1101 = vsel %vm1100, %v1066, %v1099
  %vm1102 = vcmp.eq.f32.partialorder %v1066, 0.0
  %v1103 = vand.u32 %v1066, 2147483648
  %v1104 = vsel %vm1102, %v1103, %v1101
  %v1105 = vrsqrt.pop %v1067
  %v1106 = vmul.f32 %v1067, %v1105
  %vm1107 = vcmp.eq.f32.partialorder %v1067, inf
  %v1108 = vsel %vm1107, %v1067, %v1106
  %vm1109 = vcmp.eq.f32.partialorder %v1067, 0.0
  %v1110 = vand.u32 %v1067, 2147483648
  %v1111 = vsel %vm1109, %v1110, %v1108
  %v1112 = vrsqrt.pop %v1068
  %v1113 = vmul.f32 %v1068, %v1112
  %vm1114 = vcmp.eq.f32.partialorder %v1068, inf
  %v1115 = vsel %vm1114, %v1068, %v1113
  %vm1116 = vcmp.eq.f32.partialorder %v1068, 0.0
  %v1117 = vand.u32 %v1068, 2147483648
  %v1118 = vsel %vm1116, %v1117, %v1115
  %v1119 = vrsqrt.pop %v1069
  %v1120 = vmul.f32 %v1069, %v1119
  %vm1121 = vcmp.eq.f32.partialorder %v1069, inf
  %v1122 = vsel %vm1121, %v1069, %v1120
  %vm1123 = vcmp.eq.f32.partialorder %v1069, 0.0
  %v1124 = vand.u32 %v1069, 2147483648
  %v1125 = vsel %vm1123, %v1124, %v1122
  %vm1134 = vcmask 1044480
  %v1135 = vrot.slane %v1076, 3
  %v1136 = vrot.slane %v1104, 3
  %v1137 = vsel %vm1134, %v1135, %v1136
  %v1138 = vrot.slane %v1083, 3
  %v1139 = vrot.slane %v1111, 3
  %v1140 = vsel %vm1134, %v1138, %v1139
  %v1141 = vrot.slane %v1090, 3
  %v1142 = vrot.slane %v1118, 3
  %v1143 = vsel %vm1134, %v1141, %v1142
  %v1144 = vrot.slane %v1097, 3
  %v1145 = vrot.slane %v1125, 3
  %v1146 = vsel %vm1134, %v1144, %v1145
  %1151 = vst [vmem:[%s1 + $0x80] sm:$0x78] %v1137
  %1152 = vst [vmem:[%s1 + $0x88] sm:$0x78] %v1140
  %1153 = vst [vmem:[%s1 + $0x90] sm:$0x78] %v1143
  %1154 = vst [vmem:[%s1 + $0x98] sm:$0x78] %v1146
  %v1155 = vrot.slane %v8, 1
  %v1156 = vrot.slane %v9, 1
  %v1157 = vrot.slane %v10, 1
  %v1158 = vrot.slane %v11, 1
  %v1163 = vsub.f32 %v8, %v1155
  %v1164 = vsub.f32 %v9, %v1156
  %v1165 = vsub.f32 %v10, %v1157
  %v1166 = vsub.f32 %v11, %v1158
  %v1167 = vsub.f32 %v12, %v1155
  %v1168 = vsub.f32 %v13, %v1156
  %v1169 = vsub.f32 %v14, %v1157
  %v1170 = vsub.f32 %v15, %v1158
  %v1171 = vrot.slane %v17, 1
  %v1172 = vrot.slane %v18, 1
  %v1173 = vrot.slane %v19, 1
  %v1174 = vrot.slane %v20, 1
  %v1179 = vsub.f32 %v17, %v1171
  %v1180 = vsub.f32 %v18, %v1172
  %v1181 = vsub.f32 %v19, %v1173
  %v1182 = vsub.f32 %v20, %v1174
  %v1183 = vsub.f32 %v21, %v1171
  %v1184 = vsub.f32 %v22, %v1172
  %v1185 = vsub.f32 %v23, %v1173
  %v1186 = vsub.f32 %v24, %v1174
  %v1187 = vrot.slane %v26, 1
  %v1188 = vrot.slane %v27, 1
  %v1189 = vrot.slane %v28, 1
  %v1190 = vrot.slane %v29, 1
  %v1195 = vsub.f32 %v26, %v1187
  %v1196 = vsub.f32 %v27, %v1188
  %v1197 = vsub.f32 %v28, %v1189
  %v1198 = vsub.f32 %v29, %v1190
  %v1199 = vsub.f32 %v30, %v1187
  %v1200 = vsub.f32 %v31, %v1188
  %v1201 = vsub.f32 %v32, %v1189
  %v1202 = vsub.f32 %v33, %v1190
  %v1203 = vmul.f32 %v1163, %v1163
  %v1204 = vmul.f32 %v1164, %v1164
  %v1205 = vmul.f32 %v1165, %v1165
  %v1206 = vmul.f32 %v1166, %v1166
  %v1207 = vmul.f32 %v1167, %v1167
  %v1208 = vmul.f32 %v1168, %v1168
  %v1209 = vmul.f32 %v1169, %v1169
  %v1210 = vmul.f32 %v1170, %v1170
  %v1211 = vmul.f32 %v1179, %v1179
  %v1212 = vmul.f32 %v1180, %v1180
  %v1213 = vmul.f32 %v1181, %v1181
  %v1214 = vmul.f32 %v1182, %v1182
  %v1215 = vmul.f32 %v1183, %v1183
  %v1216 = vmul.f32 %v1184, %v1184
  %v1217 = vmul.f32 %v1185, %v1185
  %v1218 = vmul.f32 %v1186, %v1186
  %v1219 = vadd.f32 %v1203, %v1211
  %v1220 = vadd.f32 %v1204, %v1212
  %v1221 = vadd.f32 %v1205, %v1213
  %v1222 = vadd.f32 %v1206, %v1214
  %v1223 = vadd.f32 %v1207, %v1215
  %v1224 = vadd.f32 %v1208, %v1216
  %v1225 = vadd.f32 %v1209, %v1217
  %v1226 = vadd.f32 %v1210, %v1218
  %v1227 = vmul.f32 %v1195, %v1195
  %v1228 = vmul.f32 %v1196, %v1196
  %v1229 = vmul.f32 %v1197, %v1197
  %v1230 = vmul.f32 %v1198, %v1198
  %v1231 = vmul.f32 %v1199, %v1199
  %v1232 = vmul.f32 %v1200, %v1200
  %v1233 = vmul.f32 %v1201, %v1201
  %v1234 = vmul.f32 %v1202, %v1202
  %v1235 = vadd.f32 %v1219, %v1227
  %v1236 = vadd.f32 %v1220, %v1228
  %v1237 = vadd.f32 %v1221, %v1229
  %v1238 = vadd.f32 %v1222, %v1230
  %v1239 = vadd.f32 %v1223, %v1231
  %v1240 = vadd.f32 %v1224, %v1232
  %v1241 = vadd.f32 %v1225, %v1233
  %v1242 = vadd.f32 %v1226, %v1234
  %v1243 = vrsqrt.pop %v1235
  %v1244 = vmul.f32 %v1235, %v1243
  %vm1245 = vcmp.eq.f32.partialorder %v1235, inf
  %v1246 = vsel %vm1245, %v1235, %v1244
  %vm1247 = vcmp.eq.f32.partialorder %v1235, 0.0
  %v1248 = vand.u32 %v1235, 2147483648
  %v1249 = vsel %vm1247, %v1248, %v1246
  %v1250 = vrsqrt.pop %v1236
  %v1251 = vmul.f32 %v1236, %v1250
  %vm1252 = vcmp.eq.f32.partialorder %v1236, inf
  %v1253 = vsel %vm1252, %v1236, %v1251
  %vm1254 = vcmp.eq.f32.partialorder %v1236, 0.0
  %v1255 = vand.u32 %v1236, 2147483648
  %v1256 = vsel %vm1254, %v1255, %v1253
  %v1257 = vrsqrt.pop %v1237
  %v1258 = vmul.f32 %v1237, %v1257
  %vm1259 = vcmp.eq.f32.partialorder %v1237, inf
  %v1260 = vsel %vm1259, %v1237, %v1258
  %vm1261 = vcmp.eq.f32.partialorder %v1237, 0.0
  %v1262 = vand.u32 %v1237, 2147483648
  %v1263 = vsel %vm1261, %v1262, %v1260
  %v1264 = vrsqrt.pop %v1238
  %v1265 = vmul.f32 %v1238, %v1264
  %vm1266 = vcmp.eq.f32.partialorder %v1238, inf
  %v1267 = vsel %vm1266, %v1238, %v1265
  %vm1268 = vcmp.eq.f32.partialorder %v1238, 0.0
  %v1269 = vand.u32 %v1238, 2147483648
  %v1270 = vsel %vm1268, %v1269, %v1267
  %v1271 = vrsqrt.pop %v1239
  %v1272 = vmul.f32 %v1239, %v1271
  %vm1273 = vcmp.eq.f32.partialorder %v1239, inf
  %v1274 = vsel %vm1273, %v1239, %v1272
  %vm1275 = vcmp.eq.f32.partialorder %v1239, 0.0
  %v1276 = vand.u32 %v1239, 2147483648
  %v1277 = vsel %vm1275, %v1276, %v1274
  %v1278 = vrsqrt.pop %v1240
  %v1279 = vmul.f32 %v1240, %v1278
  %vm1280 = vcmp.eq.f32.partialorder %v1240, inf
  %v1281 = vsel %vm1280, %v1240, %v1279
  %vm1282 = vcmp.eq.f32.partialorder %v1240, 0.0
  %v1283 = vand.u32 %v1240, 2147483648
  %v1284 = vsel %vm1282, %v1283, %v1281
  %v1285 = vrsqrt.pop %v1241
  %v1286 = vmul.f32 %v1241, %v1285
  %vm1287 = vcmp.eq.f32.partialorder %v1241, inf
  %v1288 = vsel %vm1287, %v1241, %v1286
  %vm1289 = vcmp.eq.f32.partialorder %v1241, 0.0
  %v1290 = vand.u32 %v1241, 2147483648
  %v1291 = vsel %vm1289, %v1290, %v1288
  %v1292 = vrsqrt.pop %v1242
  %v1293 = vmul.f32 %v1242, %v1292
  %vm1294 = vcmp.eq.f32.partialorder %v1242, inf
  %v1295 = vsel %vm1294, %v1242, %v1293
  %vm1296 = vcmp.eq.f32.partialorder %v1242, 0.0
  %v1297 = vand.u32 %v1242, 2147483648
  %v1298 = vsel %vm1296, %v1297, %v1295
  %1299 = vst [vmem:[%s1 + $0x80] sm:$0x80] %v1249
  %1300 = vst [vmem:[%s1 + $0x88] sm:$0x80] %v1256
  %1301 = vst [vmem:[%s1 + $0x90] sm:$0x80] %v1263
  %1302 = vst [vmem:[%s1 + $0x98] sm:$0x80] %v1270
  %1303 = vst [vmem:[%s1 + $0xa0] sm:$0x3] %v1277
  %1304 = vst [vmem:[%s1 + $0xa8] sm:$0x3] %v1284
  %1305 = vst [vmem:[%s1 + $0xb0] sm:$0x3] %v1291
  %1306 = vst [vmem:[%s1 + $0xb8] sm:$0x3] %v1298
  %v1307 = vsub.f32 %v12, %v8
  %v1308 = vsub.f32 %v13, %v9
  %v1309 = vsub.f32 %v14, %v10
  %v1310 = vsub.f32 %v15, %v11
  %v1311 = vsub.f32 %v21, %v17
  %v1312 = vsub.f32 %v22, %v18
  %v1313 = vsub.f32 %v23, %v19
  %v1314 = vsub.f32 %v24, %v20
  %v1315 = vsub.f32 %v30, %v26
  %v1316 = vsub.f32 %v31, %v27
  %v1317 = vsub.f32 %v32, %v28
  %v1318 = vsub.f32 %v33, %v29
  %v1319 = vmul.f32 %v1307, %v1307
  %v1320 = vmul.f32 %v1308, %v1308
  %v1321 = vmul.f32 %v1309, %v1309
  %v1322 = vmul.f32 %v1310, %v1310
  %v1323 = vmul.f32 %v1311, %v1311
  %v1324 = vmul.f32 %v1312, %v1312
  %v1325 = vmul.f32 %v1313, %v1313
  %v1326 = vmul.f32 %v1314, %v1314
  %v1327 = vadd.f32 %v1319, %v1323
  %v1328 = vadd.f32 %v1320, %v1324
  %v1329 = vadd.f32 %v1321, %v1325
  %v1330 = vadd.f32 %v1322, %v1326
  %v1331 = vmul.f32 %v1315, %v1315
  %v1332 = vmul.f32 %v1316, %v1316
  %v1333 = vmul.f32 %v1317, %v1317
  %v1334 = vmul.f32 %v1318, %v1318
  %v1335 = vadd.f32 %v1327, %v1331
  %v1336 = vadd.f32 %v1328, %v1332
  %v1337 = vadd.f32 %v1329, %v1333
  %v1338 = vadd.f32 %v1330, %v1334
  %v1339 = vrsqrt.pop %v1335
  %v1340 = vmul.f32 %v1335, %v1339
  %vm1341 = vcmp.eq.f32.partialorder %v1335, inf
  %v1342 = vsel %vm1341, %v1335, %v1340
  %vm1343 = vcmp.eq.f32.partialorder %v1335, 0.0
  %v1344 = vand.u32 %v1335, 2147483648
  %v1345 = vsel %vm1343, %v1344, %v1342
  %v1346 = vrsqrt.pop %v1336
  %v1347 = vmul.f32 %v1336, %v1346
  %vm1348 = vcmp.eq.f32.partialorder %v1336, inf
  %v1349 = vsel %vm1348, %v1336, %v1347
  %vm1350 = vcmp.eq.f32.partialorder %v1336, 0.0
  %v1351 = vand.u32 %v1336, 2147483648
  %v1352 = vsel %vm1350, %v1351, %v1349
  %v1353 = vrsqrt.pop %v1337
  %v1354 = vmul.f32 %v1337, %v1353
  %vm1355 = vcmp.eq.f32.partialorder %v1337, inf
  %v1356 = vsel %vm1355, %v1337, %v1354
  %vm1357 = vcmp.eq.f32.partialorder %v1337, 0.0
  %v1358 = vand.u32 %v1337, 2147483648
  %v1359 = vsel %vm1357, %v1358, %v1356
  %v1360 = vrsqrt.pop %v1338
  %v1361 = vmul.f32 %v1338, %v1360
  %vm1362 = vcmp.eq.f32.partialorder %v1338, inf
  %v1363 = vsel %vm1362, %v1338, %v1361
  %vm1364 = vcmp.eq.f32.partialorder %v1338, 0.0
  %v1365 = vand.u32 %v1338, 2147483648
  %v1366 = vsel %vm1364, %v1365, %v1363
  %v1371 = vrot.slane %v1345, 6
  %v1372 = vrot.slane %v1352, 6
  %v1373 = vrot.slane %v1359, 6
  %v1374 = vrot.slane %v1366, 6
  %1379 = vst [vmem:[%s1 + $0xa0] sm:$0xc] %v1371
  %1380 = vst [vmem:[%s1 + $0xa8] sm:$0xc] %v1372
  %1381 = vst [vmem:[%s1 + $0xb0] sm:$0xc] %v1373
  %1382 = vst [vmem:[%s1 + $0xb8] sm:$0xc] %v1374
  %v1383 = vsub.f32 %v12, %v43
  %v1384 = vsub.f32 %v13, %v44
  %v1385 = vsub.f32 %v14, %v45
  %v1386 = vsub.f32 %v15, %v46
  %v1387 = vsub.f32 %v21, %v79
  %v1388 = vsub.f32 %v22, %v80
  %v1389 = vsub.f32 %v23, %v81
  %v1390 = vsub.f32 %v24, %v82
  %v1391 = vsub.f32 %v30, %v115
  %v1392 = vsub.f32 %v31, %v116
  %v1393 = vsub.f32 %v32, %v117
  %v1394 = vsub.f32 %v33, %v118
  %v1395 = vmul.f32 %v1383, %v1383
  %v1396 = vmul.f32 %v1384, %v1384
  %v1397 = vmul.f32 %v1385, %v1385
  %v1398 = vmul.f32 %v1386, %v1386
  %v1399 = vmul.f32 %v1387, %v1387
  %v1400 = vmul.f32 %v1388, %v1388
  %v1401 = vmul.f32 %v1389, %v1389
  %v1402 = vmul.f32 %v1390, %v1390
  %v1403 = vadd.f32 %v1395, %v1399
  %v1404 = vadd.f32 %v1396, %v1400
  %v1405 = vadd.f32 %v1397, %v1401
  %v1406 = vadd.f32 %v1398, %v1402
  %v1407 = vmul.f32 %v1391, %v1391
  %v1408 = vmul.f32 %v1392, %v1392
  %v1409 = vmul.f32 %v1393, %v1393
  %v1410 = vmul.f32 %v1394, %v1394
  %v1411 = vadd.f32 %v1403, %v1407
  %v1412 = vadd.f32 %v1404, %v1408
  %v1413 = vadd.f32 %v1405, %v1409
  %v1414 = vadd.f32 %v1406, %v1410
  %v1415 = vrsqrt.pop %v1411
  %v1416 = vmul.f32 %v1411, %v1415
  %vm1417 = vcmp.eq.f32.partialorder %v1411, inf
  %v1418 = vsel %vm1417, %v1411, %v1416
  %vm1419 = vcmp.eq.f32.partialorder %v1411, 0.0
  %v1420 = vand.u32 %v1411, 2147483648
  %v1421 = vsel %vm1419, %v1420, %v1418
  %v1422 = vrsqrt.pop %v1412
  %v1423 = vmul.f32 %v1412, %v1422
  %vm1424 = vcmp.eq.f32.partialorder %v1412, inf
  %v1425 = vsel %vm1424, %v1412, %v1423
  %vm1426 = vcmp.eq.f32.partialorder %v1412, 0.0
  %v1427 = vand.u32 %v1412, 2147483648
  %v1428 = vsel %vm1426, %v1427, %v1425
  %v1429 = vrsqrt.pop %v1413
  %v1430 = vmul.f32 %v1413, %v1429
  %vm1431 = vcmp.eq.f32.partialorder %v1413, inf
  %v1432 = vsel %vm1431, %v1413, %v1430
  %vm1433 = vcmp.eq.f32.partialorder %v1413, 0.0
  %v1434 = vand.u32 %v1413, 2147483648
  %v1435 = vsel %vm1433, %v1434, %v1432
  %v1436 = vrsqrt.pop %v1414
  %v1437 = vmul.f32 %v1414, %v1436
  %vm1438 = vcmp.eq.f32.partialorder %v1414, inf
  %v1439 = vsel %vm1438, %v1414, %v1437
  %vm1440 = vcmp.eq.f32.partialorder %v1414, 0.0
  %v1441 = vand.u32 %v1414, 2147483648
  %v1442 = vsel %vm1440, %v1441, %v1439
  %v1447 = vcombine.low %v1421, %v1428
  %v1448 = vcombine.low %v1435, %v1442
  %v1450 = vunpack.c.l.s4 1966171168
  %v1451 = vunpack.c.0.s8 %v1450
  %v1452 = vlaneseq
  %v1453 = vshrl.u32 %v1452, 7
  %v1454 = vsub.s32 %v1451, %v1453
  %v1455 = vrot.slane %v1447, %v1454
  %v1457 = vunpack.c.l.s4 1966171168
  %v1458 = vunpack.c.0.s8 %v1457
  %v1459 = vlaneseq
  %v1460 = vshrl.u32 %v1459, 7
  %v1461 = vsub.s32 %v1458, %v1460
  %v1462 = vrot.slane %v1448, %v1461
  %v1463 = vcombine.high %v1455, %v1462
  %v1465 = vunpack.c.l.s4 1966171168
  %v1466 = vunpack.c.0.s8 %v1465
  %v1467 = vlaneseq
  %v1468 = vshrl.u32 %v1467, 7
  %v1469 = vsub.s32 %v1466, %v1468
  %v1470 = vrot.slane %v1463, %v1469
  %v1472 = vlaneseq
  %vm1473 = vcmp.ge.s32.totalorder %v1472, 0
  %vm1474 = vcmp.lt.s32.totalorder %v1472, 512
  %vm1475 = vmand %vm1473, %vm1474
  %s1476 = scalar_lea.vmem %s1, 164
  %1477 = vst.msk [vmem:[%s1476] ss:$8 sm:$0xf] %vm1475, %v1470
  %1478 = vst.msk [vmem:[%s1476] ss:$8 sm:$0x0] %vm1475, %v1470
  %v1487 = vrot.slane %v63, 1
  %v1488 = vrot.slane %v67, 1
  %v1489 = vsel %vm247, %v1487, %v1488
  %v1490 = vrot.slane %v64, 1
  %v1491 = vrot.slane %v68, 1
  %v1492 = vsel %vm247, %v1490, %v1491
  %v1493 = vrot.slane %v65, 1
  %v1494 = vrot.slane %v69, 1
  %v1495 = vsel %vm247, %v1493, %v1494
  %v1496 = vrot.slane %v66, 1
  %v1497 = vrot.slane %v70, 1
  %v1498 = vsel %vm247, %v1496, %v1497
  %v1507 = vmul.f32 %v63, %v1489
  %v1508 = vmul.f32 %v64, %v1492
  %v1509 = vmul.f32 %v65, %v1495
  %v1510 = vmul.f32 %v66, %v1498
  %v1511 = vmul.f32 %v67, %v1488
  %v1512 = vmul.f32 %v68, %v1491
  %v1513 = vmul.f32 %v69, %v1494
  %v1514 = vmul.f32 %v70, %v1497
  %v1523 = vrot.slane %v99, 1
  %v1524 = vrot.slane %v103, 1
  %v1525 = vsel %vm247, %v1523, %v1524
  %v1526 = vrot.slane %v100, 1
  %v1527 = vrot.slane %v104, 1
  %v1528 = vsel %vm247, %v1526, %v1527
  %v1529 = vrot.slane %v101, 1
  %v1530 = vrot.slane %v105, 1
  %v1531 = vsel %vm247, %v1529, %v1530
  %v1532 = vrot.slane %v102, 1
  %v1533 = vrot.slane %v106, 1
  %v1534 = vsel %vm247, %v1532, %v1533
  %v1543 = vmul.f32 %v99, %v1525
  %v1544 = vmul.f32 %v100, %v1528
  %v1545 = vmul.f32 %v101, %v1531
  %v1546 = vmul.f32 %v102, %v1534
  %v1547 = vmul.f32 %v103, %v1524
  %v1548 = vmul.f32 %v104, %v1527
  %v1549 = vmul.f32 %v105, %v1530
  %v1550 = vmul.f32 %v106, %v1533
  %v1551 = vadd.f32 %v1507, %v1543
  %v1552 = vadd.f32 %v1508, %v1544
  %v1553 = vadd.f32 %v1509, %v1545
  %v1554 = vadd.f32 %v1510, %v1546
  %v1555 = vadd.f32 %v1511, %v1547
  %v1556 = vadd.f32 %v1512, %v1548
  %v1557 = vadd.f32 %v1513, %v1549
  %v1558 = vadd.f32 %v1514, %v1550
  %v1567 = vrot.slane %v135, 1
  %v1568 = vrot.slane %v139, 1
  %v1569 = vsel %vm247, %v1567, %v1568
  %v1570 = vrot.slane %v136, 1
  %v1571 = vrot.slane %v140, 1
  %v1572 = vsel %vm247, %v1570, %v1571
  %v1573 = vrot.slane %v137, 1
  %v1574 = vrot.slane %v141, 1
  %v1575 = vsel %vm247, %v1573, %v1574
  %v1576 = vrot.slane %v138, 1
  %v1577 = vrot.slane %v142, 1
  %v1578 = vsel %vm247, %v1576, %v1577
  %v1587 = vmul.f32 %v135, %v1569
  %v1588 = vmul.f32 %v136, %v1572
  %v1589 = vmul.f32 %v137, %v1575
  %v1590 = vmul.f32 %v138, %v1578
  %v1591 = vmul.f32 %v139, %v1568
  %v1592 = vmul.f32 %v140, %v1571
  %v1593 = vmul.f32 %v141, %v1574
  %v1594 = vmul.f32 %v142, %v1577
  %v1595 = vadd.f32 %v1551, %v1587
  %v1596 = vadd.f32 %v1552, %v1588
  %v1597 = vadd.f32 %v1553, %v1589
  %v1598 = vadd.f32 %v1554, %v1590
  %v1599 = vadd.f32 %v1555, %v1591
  %v1600 = vadd.f32 %v1556, %v1592
  %v1601 = vadd.f32 %v1557, %v1593
  %v1602 = vadd.f32 %v1558, %v1594
  %v1611 = vrot.slane %v175, 1
  %v1612 = vrot.slane %v179, 1
  %v1613 = vsel %vm247, %v1611, %v1612
  %v1614 = vrot.slane %v176, 1
  %v1615 = vrot.slane %v180, 1
  %v1616 = vsel %vm247, %v1614, %v1615
  %v1617 = vrot.slane %v177, 1
  %v1618 = vrot.slane %v181, 1
  %v1619 = vsel %vm247, %v1617, %v1618
  %v1620 = vrot.slane %v178, 1
  %v1621 = vrot.slane %v182, 1
  %v1622 = vsel %vm247, %v1620, %v1621
  %v1631 = vmul.f32 %v175, %v1613
  %v1632 = vmul.f32 %v176, %v1616
  %v1633 = vmul.f32 %v177, %v1619
  %v1634 = vmul.f32 %v178, %v1622
  %v1635 = vmul.f32 %v179, %v1612
  %v1636 = vmul.f32 %v180, %v1615
  %v1637 = vmul.f32 %v181, %v1618
  %v1638 = vmul.f32 %v182, %v1621
  %v1639 = vrsqrt.pop %v1631
  %v1640 = vrsqrt.pop %v1632
  %v1641 = vrsqrt.pop %v1633
  %v1642 = vrsqrt.pop %v1634
  %v1643 = vrsqrt.pop %v1635
  %v1644 = vrsqrt.pop %v1636
  %v1645 = vrsqrt.pop %v1637
  %v1646 = vrsqrt.pop %v1638
  %v1647 = vmul.f32 %v1595, %v1639
  %v1648 = vmul.f32 %v1596, %v1640
  %v1649 = vmul.f32 %v1597, %v1641
  %v1650 = vmul.f32 %v1598, %v1642
  %v1651 = vmul.f32 %v1599, %v1643
  %v1652 = vmul.f32 %v1600, %v1644
  %v1653 = vmul.f32 %v1601, %v1645
  %v1654 = vmul.f32 %v1602, %v1646
  %v1663 = vrot.slane %v1647, 4
  %v1664 = vrot.slane %v1648, 4
  %v1665 = vrot.slane %v1649, 4
  %v1666 = vrot.slane %v1650, 4
  %v1667 = vrot.slane %v1651, 4
  %v1668 = vsel %vm781, %v1663, %v1667
  %v1669 = vrot.slane %v1652, 4
  %v1670 = vsel %vm781, %v1664, %v1669
  %v1671 = vrot.slane %v1653, 4
  %v1672 = vsel %vm781, %v1665, %v1671
  %v1673 = vrot.slane %v1654, 4
  %v1674 = vsel %vm781, %v1666, %v1673
  %1683 = vst [vmem:[%s1 + $0xa0] sm:$0xe0] %v1663
  %1684 = vst [vmem:[%s1 + $0xa8] sm:$0xe0] %v1664
  %1685 = vst [vmem:[%s1 + $0xb0] sm:$0xe0] %v1665
  %1686 = vst [vmem:[%s1 + $0xb8] sm:$0xe0] %v1666
  %1687 = vst [vmem:[%s1 + $0xc0] sm:$0x1f] %v1668
  %1688 = vst [vmem:[%s1 + $0xc8] sm:$0x1f] %v1670
  %1689 = vst [vmem:[%s1 + $0xd0] sm:$0x1f] %v1672
  %1690 = vst [vmem:[%s1 + $0xd8] sm:$0x1f] %v1674
  %v1691 = vmul.f32 %v99, %v1569
  %v1692 = vmul.f32 %v100, %v1572
  %v1693 = vmul.f32 %v101, %v1575
  %v1694 = vmul.f32 %v102, %v1578
  %v1695 = vmul.f32 %v135, %v1525
  %v1696 = vmul.f32 %v136, %v1528
  %v1697 = vmul.f32 %v137, %v1531
  %v1698 = vmul.f32 %v138, %v1534
  %v1699 = vsub.f32 %v1691, %v1695
  %v1700 = vsub.f32 %v1692, %v1696
  %v1701 = vsub.f32 %v1693, %v1697
  %v1702 = vsub.f32 %v1694, %v1698
  %v1703 = vmul.f32 %v135, %v1489
  %v1704 = vmul.f32 %v136, %v1492
  %v1705 = vmul.f32 %v137, %v1495
  %v1706 = vmul.f32 %v138, %v1498
  %v1707 = vmul.f32 %v63, %v1569
  %v1708 = vmul.f32 %v64, %v1572
  %v1709 = vmul.f32 %v65, %v1575
  %v1710 = vmul.f32 %v66, %v1578
  %v1711 = vsub.f32 %v1703, %v1707
  %v1712 = vsub.f32 %v1704, %v1708
  %v1713 = vsub.f32 %v1705, %v1709
  %v1714 = vsub.f32 %v1706, %v1710
  %v1715 = vmul.f32 %v63, %v1525
  %v1716 = vmul.f32 %v64, %v1528
  %v1717 = vmul.f32 %v65, %v1531
  %v1718 = vmul.f32 %v66, %v1534
  %v1719 = vmul.f32 %v99, %v1489
  %v1720 = vmul.f32 %v100, %v1492
  %v1721 = vmul.f32 %v101, %v1495
  %v1722 = vmul.f32 %v102, %v1498
  %v1723 = vsub.f32 %v1715, %v1719
  %v1724 = vsub.f32 %v1716, %v1720
  %v1725 = vsub.f32 %v1717, %v1721
  %v1726 = vsub.f32 %v1718, %v1722
  %v1727 = vmul.f32 %v103, %v1568
  %v1728 = vmul.f32 %v104, %v1571
  %v1729 = vmul.f32 %v105, %v1574
  %v1730 = vmul.f32 %v106, %v1577
  %v1731 = vmul.f32 %v139, %v1524
  %v1732 = vmul.f32 %v140, %v1527
  %v1733 = vmul.f32 %v141, %v1530
  %v1734 = vmul.f32 %v142, %v1533
  %v1735 = vsub.f32 %v1727, %v1731
  %v1736 = vsub.f32 %v1728, %v1732
  %v1737 = vsub.f32 %v1729, %v1733
  %v1738 = vsub.f32 %v1730, %v1734
  %v1739 = vmul.f32 %v139, %v1488
  %v1740 = vmul.f32 %v140, %v1491
  %v1741 = vmul.f32 %v141, %v1494
  %v1742 = vmul.f32 %v142, %v1497
  %v1743 = vmul.f32 %v67, %v1568
  %v1744 = vmul.f32 %v68, %v1571
  %v1745 = vmul.f32 %v69, %v1574
  %v1746 = vmul.f32 %v70, %v1577
  %v1747 = vsub.f32 %v1739, %v1743
  %v1748 = vsub.f32 %v1740, %v1744
  %v1749 = vsub.f32 %v1741, %v1745
  %v1750 = vsub.f32 %v1742, %v1746
  %v1751 = vmul.f32 %v67, %v1524
  %v1752 = vmul.f32 %v68, %v1527
  %v1753 = vmul.f32 %v69, %v1530
  %v1754 = vmul.f32 %v70, %v1533
  %v1755 = vmul.f32 %v103, %v1488
  %v1756 = vmul.f32 %v104, %v1491
  %v1757 = vmul.f32 %v105, %v1494
  %v1758 = vmul.f32 %v106, %v1497
  %v1759 = vsub.f32 %v1751, %v1755
  %v1760 = vsub.f32 %v1752, %v1756
  %v1761 = vsub.f32 %v1753, %v1757
  %v1762 = vsub.f32 %v1754, %v1758
  %v1763 = vmul.f32 %v1711, %v135
  %v1764 = vmul.f32 %v1712, %v136
  %v1765 = vmul.f32 %v1713, %v137
  %v1766 = vmul.f32 %v1714, %v138
  %v1767 = vmul.f32 %v1747, %v139
  %v1768 = vmul.f32 %v1748, %v140
  %v1769 = vmul.f32 %v1749, %v141
  %v1770 = vmul.f32 %v1750, %v142
  %v1771 = vmul.f32 %v1723, %v99
  %v1772 = vmul.f32 %v1724, %v100
  %v1773 = vmul.f32 %v1725, %v101
  %v1774 = vmul.f32 %v1726, %v102
  %v1775 = vmul.f32 %v1759, %v103
  %v1776 = vmul.f32 %v1760, %v104
  %v1777 = vmul.f32 %v1761, %v105
  %v1778 = vmul.f32 %v1762, %v106
  %v1779 = vsub.f32 %v1763, %v1771
  %v1780 = vsub.f32 %v1764, %v1772
  %v1781 = vsub.f32 %v1765, %v1773
  %v1782 = vsub.f32 %v1766, %v1774
  %v1783 = vsub.f32 %v1767, %v1775
  %v1784 = vsub.f32 %v1768, %v1776
  %v1785 = vsub.f32 %v1769, %v1777
  %v1786 = vsub.f32 %v1770, %v1778
  %v1787 = vmul.f32 %v1723, %v63
  %v1788 = vmul.f32 %v1724, %v64
  %v1789 = vmul.f32 %v1725, %v65
  %v1790 = vmul.f32 %v1726, %v66
  %v1791 = vmul.f32 %v1759, %v67
  %v1792 = vmul.f32 %v1760, %v68
  %v1793 = vmul.f32 %v1761, %v69
  %v1794 = vmul.f32 %v1762, %v70
  %v1795 = vmul.f32 %v1699, %v135
  %v1796 = vmul.f32 %v1700, %v136
  %v1797 = vmul.f32 %v1701, %v137
  %v1798 = vmul.f32 %v1702, %v138
  %v1799 = vmul.f32 %v1735, %v139
  %v1800 = vmul.f32 %v1736, %v140
  %v1801 = vmul.f32 %v1737, %v141
  %v1802 = vmul.f32 %v1738, %v142
  %v1803 = vsub.f32 %v1787, %v1795
  %v1804 = vsub.f32 %v1788, %v1796
  %v1805 = vsub.f32 %v1789, %v1797
  %v1806 = vsub.f32 %v1790, %v1798
  %v1807 = vsub.f32 %v1791, %v1799
  %v1808 = vsub.f32 %v1792, %v1800
  %v1809 = vsub.f32 %v1793, %v1801
  %v1810 = vsub.f32 %v1794, %v1802
  %v1811 = vmul.f32 %v1699, %v99
  %v1812 = vmul.f32 %v1700, %v100
  %v1813 = vmul.f32 %v1701, %v101
  %v1814 = vmul.f32 %v1702, %v102
  %v1815 = vmul.f32 %v1735, %v103
  %v1816 = vmul.f32 %v1736, %v104
  %v1817 = vmul.f32 %v1737, %v105
  %v1818 = vmul.f32 %v1738, %v106
  %v1819 = vmul.f32 %v1711, %v63
  %v1820 = vmul.f32 %v1712, %v64
  %v1821 = vmul.f32 %v1713, %v65
  %v1822 = vmul.f32 %v1714, %v66
  %v1823 = vmul.f32 %v1747, %v67
  %v1824 = vmul.f32 %v1748, %v68
  %v1825 = vmul.f32 %v1749, %v69
  %v1826 = vmul.f32 %v1750, %v70
  %v1827 = vsub.f32 %v1811, %v1819
  %v1828 = vsub.f32 %v1812, %v1820
  %v1829 = vsub.f32 %v1813, %v1821
  %v1830 = vsub.f32 %v1814, %v1822
  %v1831 = vsub.f32 %v1815, %v1823
  %v1832 = vsub.f32 %v1816, %v1824
  %v1833 = vsub.f32 %v1817, %v1825
  %v1834 = vsub.f32 %v1818, %v1826
  %v1835 = vmul.f32 %v1699, %v1699
  %v1836 = vmul.f32 %v1700, %v1700
  %v1837 = vmul.f32 %v1701, %v1701
  %v1838 = vmul.f32 %v1702, %v1702
  %v1839 = vmul.f32 %v1711, %v1711
  %v1840 = vmul.f32 %v1712, %v1712
  %v1841 = vmul.f32 %v1713, %v1713
  %v1842 = vmul.f32 %v1714, %v1714
  %v1843 = vadd.f32 %v1835, %v1839
  %v1844 = vadd.f32 %v1836, %v1840
  %v1845 = vadd.f32 %v1837, %v1841
  %v1846 = vadd.f32 %v1838, %v1842
  %v1847 = vmul.f32 %v1723, %v1723
  %v1848 = vmul.f32 %v1724, %v1724
  %v1849 = vmul.f32 %v1725, %v1725
  %v1850 = vmul.f32 %v1726, %v1726
  %v1851 = vadd.f32 %v1843, %v1847
  %v1852 = vadd.f32 %v1844, %v1848
  %v1853 = vadd.f32 %v1845, %v1849
  %v1854 = vadd.f32 %v1846, %v1850
  %v1855 = vmul.f32 %v1735, %v1735
  %v1856 = vmul.f32 %v1736, %v1736
  %v1857 = vmul.f32 %v1737, %v1737
  %v1858 = vmul.f32 %v1738, %v1738
  %v1859 = vmul.f32 %v1747, %v1747
  %v1860 = vmul.f32 %v1748, %v1748
  %v1861 = vmul.f32 %v1749, %v1749
  %v1862 = vmul.f32 %v1750, %v1750
  %v1863 = vadd.f32 %v1855, %v1859
  %v1864 = vadd.f32 %v1856, %v1860
  %v1865 = vadd.f32 %v1857, %v1861
  %v1866 = vadd.f32 %v1858, %v1862
  %v1867 = vmul.f32 %v1759, %v1759
  %v1868 = vmul.f32 %v1760, %v1760
  %v1869 = vmul.f32 %v1761, %v1761
  %v1870 = vmul.f32 %v1762, %v1762
  %v1871 = vadd.f32 %v1863, %v1867
  %v1872 = vadd.f32 %v1864, %v1868
  %v1873 = vadd.f32 %v1865, %v1869
  %v1874 = vadd.f32 %v1866, %v1870
  %v1875 = vmul.f32 %v1779, %v1779
  %v1876 = vmul.f32 %v1780, %v1780
  %v1877 = vmul.f32 %v1781, %v1781
  %v1878 = vmul.f32 %v1782, %v1782
  %v1879 = vmul.f32 %v1783, %v1783
  %v1880 = vmul.f32 %v1784, %v1784
  %v1881 = vmul.f32 %v1785, %v1785
  %v1882 = vmul.f32 %v1786, %v1786
  %v1883 = vmul.f32 %v1803, %v1803
  %v1884 = vmul.f32 %v1804, %v1804
  %v1885 = vmul.f32 %v1805, %v1805
  %v1886 = vmul.f32 %v1806, %v1806
  %v1887 = vmul.f32 %v1807, %v1807
  %v1888 = vmul.f32 %v1808, %v1808
  %v1889 = vmul.f32 %v1809, %v1809
  %v1890 = vmul.f32 %v1810, %v1810
  %v1891 = vadd.f32 %v1875, %v1883
  %v1892 = vadd.f32 %v1876, %v1884
  %v1893 = vadd.f32 %v1877, %v1885
  %v1894 = vadd.f32 %v1878, %v1886
  %v1895 = vadd.f32 %v1879, %v1887
  %v1896 = vadd.f32 %v1880, %v1888
  %v1897 = vadd.f32 %v1881, %v1889
  %v1898 = vadd.f32 %v1882, %v1890
  %v1899 = vmul.f32 %v1827, %v1827
  %v1900 = vmul.f32 %v1828, %v1828
  %v1901 = vmul.f32 %v1829, %v1829
  %v1902 = vmul.f32 %v1830, %v1830
  %v1903 = vmul.f32 %v1831, %v1831
  %v1904 = vmul.f32 %v1832, %v1832
  %v1905 = vmul.f32 %v1833, %v1833
  %v1906 = vmul.f32 %v1834, %v1834
  %v1907 = vadd.f32 %v1891, %v1899
  %v1908 = vadd.f32 %v1892, %v1900
  %v1909 = vadd.f32 %v1893, %v1901
  %v1910 = vadd.f32 %v1894, %v1902
  %v1911 = vadd.f32 %v1895, %v1903
  %v1912 = vadd.f32 %v1896, %v1904
  %v1913 = vadd.f32 %v1897, %v1905
  %v1914 = vadd.f32 %v1898, %v1906
  %v1923 = vrot.slane %v1699, 1
  %v1924 = vrot.slane %v1735, 1
  %v1925 = vsel %vm247, %v1923, %v1924
  %v1926 = vrot.slane %v1700, 1
  %v1927 = vrot.slane %v1736, 1
  %v1928 = vsel %vm247, %v1926, %v1927
  %v1929 = vrot.slane %v1701, 1
  %v1930 = vrot.slane %v1737, 1
  %v1931 = vsel %vm247, %v1929, %v1930
  %v1932 = vrot.slane %v1702, 1
  %v1933 = vrot.slane %v1738, 1
  %v1934 = vsel %vm247, %v1932, %v1933
  %v1939 = vmul.f32 %v1699, %v1925
  %v1940 = vmul.f32 %v1700, %v1928
  %v1941 = vmul.f32 %v1701, %v1931
  %v1942 = vmul.f32 %v1702, %v1934
  %v1951 = vrot.slane %v1711, 1
  %v1952 = vrot.slane %v1747, 1
  %v1953 = vsel %vm247, %v1951, %v1952
  %v1954 = vrot.slane %v1712, 1
  %v1955 = vrot.slane %v1748, 1
  %v1956 = vsel %vm247, %v1954, %v1955
  %v1957 = vrot.slane %v1713, 1
  %v1958 = vrot.slane %v1749, 1
  %v1959 = vsel %vm247, %v1957, %v1958
  %v1960 = vrot.slane %v1714, 1
  %v1961 = vrot.slane %v1750, 1
  %v1962 = vsel %vm247, %v1960, %v1961
  %v1967 = vmul.f32 %v1711, %v1953
  %v1968 = vmul.f32 %v1712, %v1956
  %v1969 = vmul.f32 %v1713, %v1959
  %v1970 = vmul.f32 %v1714, %v1962
  %v1971 = vadd.f32 %v1939, %v1967
  %v1972 = vadd.f32 %v1940, %v1968
  %v1973 = vadd.f32 %v1941, %v1969
  %v1974 = vadd.f32 %v1942, %v1970
  %v1983 = vrot.slane %v1723, 1
  %v1984 = vrot.slane %v1759, 1
  %v1985 = vsel %vm247, %v1983, %v1984
  %v1986 = vrot.slane %v1724, 1
  %v1987 = vrot.slane %v1760, 1
  %v1988 = vsel %vm247, %v1986, %v1987
  %v1989 = vrot.slane %v1725, 1
  %v1990 = vrot.slane %v1761, 1
  %v1991 = vsel %vm247, %v1989, %v1990
  %v1992 = vrot.slane %v1726, 1
  %v1993 = vrot.slane %v1762, 1
  %v1994 = vsel %vm247, %v1992, %v1993
  %v1999 = vmul.f32 %v1723, %v1985
  %v2000 = vmul.f32 %v1724, %v1988
  %v2001 = vmul.f32 %v1725, %v1991
  %v2002 = vmul.f32 %v1726, %v1994
  %v2003 = vadd.f32 %v1971, %v1999
  %v2004 = vadd.f32 %v1972, %v2000
  %v2005 = vadd.f32 %v1973, %v2001
  %v2006 = vadd.f32 %v1974, %v2002
  %v2015 = vrot.slane %v1851, 1
  %v2016 = vrot.slane %v1871, 1
  %v2017 = vsel %vm247, %v2015, %v2016
  %v2018 = vrot.slane %v1852, 1
  %v2019 = vrot.slane %v1872, 1
  %v2020 = vsel %vm247, %v2018, %v2019
  %v2021 = vrot.slane %v1853, 1
  %v2022 = vrot.slane %v1873, 1
  %v2023 = vsel %vm247, %v2021, %v2022
  %v2024 = vrot.slane %v1854, 1
  %v2025 = vrot.slane %v1874, 1
  %v2026 = vsel %vm247, %v2024, %v2025
  %v2031 = vmul.f32 %v1851, %v2017
  %v2032 = vmul.f32 %v1852, %v2020
  %v2033 = vmul.f32 %v1853, %v2023
  %v2034 = vmul.f32 %v1854, %v2026
  %v2035 = vrsqrt.pop %v2031
  %v2036 = vrsqrt.pop %v2032
  %v2037 = vrsqrt.pop %v2033
  %v2038 = vrsqrt.pop %v2034
  %v2039 = vmul.f32 %v2003, %v2035
  %v2040 = vmul.f32 %v2004, %v2036
  %v2041 = vmul.f32 %v2005, %v2037
  %v2042 = vmul.f32 %v2006, %v2038
  %v2047 = vrot.slane %v2039, 4
  %v2048 = vrot.slane %v2040, 4
  %v2049 = vrot.slane %v2041, 4
  %v2050 = vrot.slane %v2042, 4
  %2055 = vst [vmem:[%s1 + $0xc0] sm:$0xe0] %v2047
  %2056 = vst [vmem:[%s1 + $0xc8] sm:$0xe0] %v2048
  %2057 = vst [vmem:[%s1 + $0xd0] sm:$0xe0] %v2049
  %2058 = vst [vmem:[%s1 + $0xd8] sm:$0xe0] %v2050
  %2059 = vst [vmem:[%s1 + $0xe0] sm:$0xf] %v2047
  %2060 = vst [vmem:[%s1 + $0xe8] sm:$0xf] %v2048
  %2061 = vst [vmem:[%s1 + $0xf0] sm:$0xf] %v2049
  %2062 = vst [vmem:[%s1 + $0xf8] sm:$0xf] %v2050
  %v2071 = vrot.slane %v1779, 1
  %v2072 = vrot.slane %v1783, 1
  %v2073 = vsel %vm247, %v2071, %v2072
  %v2074 = vrot.slane %v1780, 1
  %v2075 = vrot.slane %v1784, 1
  %v2076 = vsel %vm247, %v2074, %v2075
  %v2077 = vrot.slane %v1781, 1
  %v2078 = vrot.slane %v1785, 1
  %v2079 = vsel %vm247, %v2077, %v2078
  %v2080 = vrot.slane %v1782, 1
  %v2081 = vrot.slane %v1786, 1
  %v2082 = vsel %vm247, %v2080, %v2081
  %v2087 = vmul.f32 %v1699, %v2073
  %v2088 = vmul.f32 %v1700, %v2076
  %v2089 = vmul.f32 %v1701, %v2079
  %v2090 = vmul.f32 %v1702, %v2082
  %v2099 = vrot.slane %v1803, 1
  %v2100 = vrot.slane %v1807, 1
  %v2101 = vsel %vm247, %v2099, %v2100
  %v2102 = vrot.slane %v1804, 1
  %v2103 = vrot.slane %v1808, 1
  %v2104 = vsel %vm247, %v2102, %v2103
  %v2105 = vrot.slane %v1805, 1
  %v2106 = vrot.slane %v1809, 1
  %v2107 = vsel %vm247, %v2105, %v2106
  %v2108 = vrot.slane %v1806, 1
  %v2109 = vrot.slane %v1810, 1
  %v2110 = vsel %vm247, %v2108, %v2109
  %v2115 = vmul.f32 %v1711, %v2101
  %v2116 = vmul.f32 %v1712, %v2104
  %v2117 = vmul.f32 %v1713, %v2107
  %v2118 = vmul.f32 %v1714, %v2110
  %v2119 = vadd.f32 %v2087, %v2115
  %v2120 = vadd.f32 %v2088, %v2116
  %v2121 = vadd.f32 %v2089, %v2117
  %v2122 = vadd.f32 %v2090, %v2118
  %v2131 = vrot.slane %v1827, 1
  %v2132 = vrot.slane %v1831, 1
  %v2133 = vsel %vm247, %v2131, %v2132
  %v2134 = vrot.slane %v1828, 1
  %v2135 = vrot.slane %v1832, 1
  %v2136 = vsel %vm247, %v2134, %v2135
  %v2137 = vrot.slane %v1829, 1
  %v2138 = vrot.slane %v1833, 1
  %v2139 = vsel %vm247, %v2137, %v2138
  %v2140 = vrot.slane %v1830, 1
  %v2141 = vrot.slane %v1834, 1
  %v2142 = vsel %vm247, %v2140, %v2141
  %v2147 = vmul.f32 %v1723, %v2133
  %v2148 = vmul.f32 %v1724, %v2136
  %v2149 = vmul.f32 %v1725, %v2139
  %v2150 = vmul.f32 %v1726, %v2142
  %v2151 = vadd.f32 %v2119, %v2147
  %v2152 = vadd.f32 %v2120, %v2148
  %v2153 = vadd.f32 %v2121, %v2149
  %v2154 = vadd.f32 %v2122, %v2150
  %v2163 = vrot.slane %v1907, 1
  %v2164 = vrot.slane %v1911, 1
  %v2165 = vsel %vm247, %v2163, %v2164
  %v2166 = vrot.slane %v1908, 1
  %v2167 = vrot.slane %v1912, 1
  %v2168 = vsel %vm247, %v2166, %v2167
  %v2169 = vrot.slane %v1909, 1
  %v2170 = vrot.slane %v1913, 1
  %v2171 = vsel %vm247, %v2169, %v2170
  %v2172 = vrot.slane %v1910, 1
  %v2173 = vrot.slane %v1914, 1
  %v2174 = vsel %vm247, %v2172, %v2173
  %v2179 = vmul.f32 %v1851, %v2165
  %v2180 = vmul.f32 %v1852, %v2168
  %v2181 = vmul.f32 %v1853, %v2171
  %v2182 = vmul.f32 %v1854, %v2174
  %v2183 = vrsqrt.pop %v2179
  %v2184 = vrsqrt.pop %v2180
  %v2185 = vrsqrt.pop %v2181
  %v2186 = vrsqrt.pop %v2182
  %v2187 = vmul.f32 %v2151, %v2183
  %v2188 = vmul.f32 %v2152, %v2184
  %v2189 = vmul.f32 %v2153, %v2185
  %v2190 = vmul.f32 %v2154, %v2186
  %v2195 = vrot.slane %v2187, 5
  %v2196 = vrot.slane %v2188, 5
  %v2197 = vrot.slane %v2189, 5
  %v2198 = vrot.slane %v2190, 5
  %2203 = vst [vmem:[%s1 + $0xe0] sm:$0xf0] %v2195
  %2204 = vst [vmem:[%s1 + $0xe8] sm:$0xf0] %v2196
  %2205 = vst [vmem:[%s1 + $0xf0] sm:$0xf0] %v2197
  %2206 = vst [vmem:[%s1 + $0xf8] sm:$0xf0] %v2198
  %2207 = vst [vmem:[%s1 + $0x100] sm:$0x7] %v2195
  %2208 = vst [vmem:[%s1 + $0x108] sm:$0x7] %v2196
  %2209 = vst [vmem:[%s1 + $0x110] sm:$0x7] %v2197
  %2210 = vst [vmem:[%s1 + $0x118] sm:$0x7] %v2198
  // Predicated region
  $region6: #{feature_old_forward.1} parent=0 // pred_check
    _
  $region7: #{feature_old_forward.1} parent=0 // pred_check_branch
    %2212 = sbr.rel (0) target = $region9
  $region8: #{feature_old_forward.1} parent=0 // pred_region
    _
  $region9: #{feature_old_forward.1} parent=0 // pred_fallthru
    _
  // Predicated region
  $region10: #{feature_old_forward.1} parent=0 // pred_check
    _
  $region11: #{feature_old_forward.1} parent=0 // pred_check_branch
    %2214 = sbr.rel (0) target = $region13
  $region12: #{feature_old_forward.1} parent=0 // pred_region
    _
  $region13: #{feature_old_forward.1} parent=0 // pred_fallthru
    _

</llo_original>
